<compile_context>
chip_gen: v7x
topology: tpu7x:2x2x1
jax: 0.10.0
libtpu: 0.0.40
codegen_flags: <defaults>
</compile_context>

<pallas_src>
import functools

import jax
import jax.numpy as jnp
from jax.experimental import pallas as pl
from jax.experimental.pallas import tpu as pltpu


def eflstm_kernel(x_ref, w_ih_ref, b_ref, w_hh_ref,
                  fc1_w_ref, fc1_b_ref, fc2_w_ref, fc2_b_ref,
                  out_ref, *, T):
    TB, D = x_ref.shape
    Bp = TB // T
    G = w_hh_ref.shape[0]          # 4 * H (zero rows [H, G))
    H = G // 4

    # ---- hoisted input projection: one (T*Bp, D) @ (D, 4H) matmul ------------
    xw = jnp.dot(x_ref[...], w_ih_ref[...], preferred_element_type=jnp.float32)
    xw = xw + b_ref[...]           # (T*Bp, 4H), time-major: rows [t*Bp,(t+1)*Bp)

    w_hh = w_hh_ref[...]           # (4H, 4H), rows [H,4H) are zero

    # lane mask selecting the tanh (cell-candidate) gate region [2H, 3H)
    lane = jax.lax.broadcasted_iota(jnp.int32, (Bp, G), 1)
    tanh_mask = (lane >= 2 * H) & (lane < 3 * H)

    # h/c loop-carried, full 4H lane width; only lanes [0, H) are meaningful.
    h = jnp.zeros((Bp, G), jnp.float32)
    c = jnp.zeros((Bp, G), jnp.float32)

    # ---- recurrence: only the sequential h @ W_hh stays per-step -------------
    # Fully unrolled (T static & small). For large T use lax.fori_loop(unroll=4..8)
    # or a T-chunked grid axis to bound live ranges / VMEM (v7x).
    for t in range(T):
        g = xw[t * Bp:(t + 1) * Bp, :] + jnp.dot(
            h, w_hh, preferred_element_type=jnp.float32)
        # 2 full-vreg EUP pushes instead of 4 quarter-vreg ones; gate order
        # (i, f, g, o) as in torch.nn.LSTMCell.
        act = jnp.where(tanh_mask, jnp.tanh(g), jax.nn.sigmoid(g))
        i_b = act                                      # i already at lanes [0, H)
        f_b = pltpu.roll(act, shift=3 * H, axis=1)     # f block -> lanes [0, H)
        g_b = pltpu.roll(act, shift=2 * H, axis=1)     # g block -> lanes [0, H)
        o_b = pltpu.roll(act, shift=1 * H, axis=1)     # o block -> lanes [0, H)
        # lanes [H, 4H) carry bounded garbage (|.| <= 1 per factor); they are
        # annihilated by the zero-padded rows of w_hh / fc1_w.
        c = f_b * c + i_b * g_b
        h = o_b * jnp.tanh(c)

    # ---- SimpleNet head: Linear -> ReLU -> [dropout no-op] -> Linear ---------
    hid = jnp.dot(h, fc1_w_ref[...], preferred_element_type=jnp.float32)
    hid = jnp.maximum(hid + fc1_b_ref[...], 0.0)
    out = jnp.dot(hid, fc2_w_ref[...], preferred_element_type=jnp.float32)
    out_ref[...] = (out + fc2_b_ref[...]).astype(out_ref.dtype)  # lane-dense store


def eflstm_forward(in_modalities, params):
    """in_modalities: list of float arrays [B, T, d_i] (already embedded).
    params: dict with LSTMCell + SimpleNet weights (see init_params)."""
    x = jnp.concatenate(in_modalities, axis=2).astype(jnp.float32)  # [B, T, D]
    B, T, D = x.shape
    H = params["w_hh_t"].shape[0]
    C = params["fc1_w_t"].shape[1]
    O = params["fc2_w_t"].shape[1]
    G = 4 * H

    SUB, LANE = 8, 128
    Bp = ((B + SUB - 1) // SUB) * SUB                 # pad batch to sublane multiple
    Cp = ((C + LANE - 1) // LANE) * LANE              # pad head widths to lane-dense
    Op = ((O + LANE - 1) // LANE) * LANE

    # time-major + batch-padded + flattened input: (T*Bp, D); per-step slices in
    # the kernel are then leading-axis, sublane-aligned.
    xp = jnp.pad(x, ((0, Bp - B), (0, 0), (0, 0)))
    x_tm = jnp.transpose(xp, (1, 0, 2)).reshape(T * Bp, D)

    w_ih_t = params["w_ih_t"]                                   # [D, 4H]
    b = (params["b_ih"] + params["b_hh"]).reshape(1, G)         # fused bias
    # zero-row padding absorbs the garbage lanes [H, 4H) of the full-width h
    w_hh_p = jnp.pad(params["w_hh_t"], ((0, G - H), (0, 0)))    # [4H, 4H]
    fc1_w_p = jnp.pad(params["fc1_w_t"], ((0, G - H), (0, Cp - C)))
    fc1_b_p = jnp.pad(params["fc1_b"], (0, Cp - C)).reshape(1, Cp)
    fc2_w_p = jnp.pad(params["fc2_w_t"], ((0, Cp - C), (0, Op - O)))
    fc2_b_p = jnp.pad(params["fc2_b"], (0, Op - O)).reshape(1, Op)

    vmem = lambda: pl.BlockSpec(memory_space=pltpu.MemorySpace.VMEM)

    out = pl.pallas_call(
        functools.partial(eflstm_kernel, T=T),
        out_shape=jax.ShapeDtypeStruct((Bp, Op), jnp.float32),
        # single invocation (no grid): everything fits comfortably in VMEM and
        # stays resident for the whole kernel.  (Add a "parallel" batch grid
        # axis / T-chunked arbitrary axis when scaling up, esp. on v7x.)
        in_specs=[vmem() for _ in range(8)],
        out_specs=vmem(),
    )(x_tm, w_ih_t, b, w_hh_p, fc1_w_p, fc1_b_p, fc2_w_p, fc2_b_p)
    return out[:B, :O]


def init_params(key, total_input_dim, hidden_dim, output_cell_dim, output_dim):
    """Deterministic synthetic init (PyTorch-style uniform(-1/sqrt(H), 1/sqrt(H)))."""
    ks = jax.random.split(key, 10)
    s = 1.0 / jnp.sqrt(hidden_dim)
    sc = 1.0 / jnp.sqrt(output_cell_dim)
    u = lambda k, shape, scale: jax.random.uniform(
        k, shape, jnp.float32, minval=-scale, maxval=scale)
    return {
        # LSTMCell params (stored pre-transposed for the kernel)
        "w_ih_t": u(ks[0], (total_input_dim, 4 * hidden_dim), s),
        "w_hh_t": u(ks[1], (hidden_dim, 4 * hidden_dim), s),
        "b_ih":   u(ks[2], (4 * hidden_dim,), s),
        "b_hh":   u(ks[3], (4 * hidden_dim,), s),
        # SimpleNet: Linear(H, C) -> ReLU -> Dropout -> Linear(C, O)
        "fc1_w_t": u(ks[4], (hidden_dim, output_cell_dim), s),
        "fc1_b":   u(ks[5], (output_cell_dim,), s),
        "fc2_w_t": u(ks[6], (output_cell_dim, output_dim), sc),
        "fc2_b":   u(ks[7], (output_dim,), sc),
    }


def _reference(in_modalities, params):
    """Pure-JAX reference of the same forward, for a sanity check."""
    x = jnp.concatenate(in_modalities, axis=2).astype(jnp.float32)  # [B, T, D]
    B, T, D = x.shape
    H = params["w_hh_t"].shape[0]
    h = jnp.zeros((B, H), jnp.float32)
    c = jnp.zeros((B, H), jnp.float32)
    b = params["b_ih"] + params["b_hh"]
    for t in range(T):
        g = x[:, t, :] @ params["w_ih_t"] + h @ params["w_hh_t"] + b
        i = jax.nn.sigmoid(g[:, 0 * H:1 * H])
        f = jax.nn.sigmoid(g[:, 1 * H:2 * H])
        gg = jnp.tanh(g[:, 2 * H:3 * H])
        o = jax.nn.sigmoid(g[:, 3 * H:4 * H])
        c = f * c + i * gg
        h = o * jnp.tanh(c)
    hid = jnp.maximum(h @ params["fc1_w_t"] + params["fc1_b"], 0.0)
    return hid @ params["fc2_w_t"] + params["fc2_b"]


if __name__ == "__main__":
    # small synthetic config implied by the module's forward
    batch, seq = 2, 8
    input_dims = [4, 4, 8]          # three modalities, already-embedded floats
    total_input_dim = sum(input_dims)
    hidden_dim = 32
    output_cell_dim = 32
    output_dim = 4

    key = jax.random.PRNGKey(0)
    k_params, k_m0, k_m1, k_m2 = jax.random.split(key, 4)
    params = init_params(k_params, total_input_dim, hidden_dim,
                         output_cell_dim, output_dim)

    # modalities are 3-D float tensors, so the nn.Embedding branch is not taken
    in_modalities = [
        jax.random.normal(k_m0, (batch, seq, input_dims[0]), jnp.float32),
        jax.random.normal(k_m1, (batch, seq, input_dims[1]), jnp.float32),
        jax.random.normal(k_m2, (batch, seq, input_dims[2]), jnp.float32),
    ]

    out = eflstm_forward(in_modalities, params)
    out = jax.block_until_ready(out)
    assert out.shape == (batch, output_dim)

    ref = _reference(in_modalities, params)
    assert jnp.allclose(out, ref, atol=1e-5, rtol=1e-5), (out, ref)

    print("KERNEL_OK")
</pallas_src>

<mosaic_0001>
module attributes {stable_mosaic.version = 11 : i64} {
  func.func @eflstm_kernel(%arg0: memref<64x16xf32, #tpu.memory_space<vmem>>, %arg1: memref<16x128xf32, #tpu.memory_space<vmem>>, %arg2: memref<1x128xf32, #tpu.memory_space<vmem>>, %arg3: memref<128x128xf32, #tpu.memory_space<vmem>>, %arg4: memref<128x128xf32, #tpu.memory_space<vmem>>, %arg5: memref<1x128xf32, #tpu.memory_space<vmem>>, %arg6: memref<128x128xf32, #tpu.memory_space<vmem>>, %arg7: memref<1x128xf32, #tpu.memory_space<vmem>>, %arg8: memref<8x128xf32, #tpu.memory_space<vmem>>) attributes {dimension_semantics = [], scalar_prefetch = 0 : i64, scratch_operands = 0 : i64, tpu.core_type = #tpu.core_type<tc>} {
    %c0 = arith.constant 0 : index
    %c0_0 = arith.constant 0 : index
    %0 = vector.load %arg0[%c0, %c0_0] : memref<64x16xf32, #tpu.memory_space<vmem>>, vector<64x16xf32>
    %c0_1 = arith.constant 0 : index
    %c0_2 = arith.constant 0 : index
    %1 = vector.load %arg1[%c0_1, %c0_2] : memref<16x128xf32, #tpu.memory_space<vmem>>, vector<16x128xf32>
    %cst = arith.constant dense<0.000000e+00> : vector<64x128xf32>
    %2 = tpu.matmul %0, %1, %cst {dimension_numbers = #tpu.dot_dimension_numbers<[1], [0], [0], [1], [0, 0, 1, 1], [], []>} : vector<64x16xf32>, vector<16x128xf32>, vector<64x128xf32> -> vector<64x128xf32>
    %c0_3 = arith.constant 0 : index
    %c0_4 = arith.constant 0 : index
    %3 = vector.load %arg2[%c0_3, %c0_4] : memref<1x128xf32, #tpu.memory_space<vmem>>, vector<1x128xf32>
    %4 = vector.broadcast %3 : vector<1x128xf32> to vector<64x128xf32>
    %5 = arith.addf %2, %4 : vector<64x128xf32>
    %c0_5 = arith.constant 0 : index
    %c0_6 = arith.constant 0 : index
    %6 = vector.load %arg3[%c0_5, %c0_6] : memref<128x128xf32, #tpu.memory_space<vmem>>, vector<128x128xf32>
    %7 = tpu.iota {dimensions = array<i32: 1>} : vector<8x128xi32>
    %c64_i32 = arith.constant 64 : i32
    %8 = vector.broadcast %c64_i32 : i32 to vector<8x128xi32>
    %9 = arith.cmpi sge, %7, %8 : vector<8x128xi32>
    %c96_i32 = arith.constant 96 : i32
    %10 = vector.broadcast %c96_i32 : i32 to vector<8x128xi32>
    %11 = arith.cmpi slt, %7, %10 : vector<8x128xi32>
    %12 = arith.andi %9, %11 : vector<8x128xi1>
    %cst_7 = arith.constant 0.000000e+00 : f32
    %13 = vector.broadcast %cst_7 : f32 to vector<8x128xf32>
    %cst_8 = arith.constant 0.000000e+00 : f32
    %14 = vector.broadcast %cst_8 : f32 to vector<8x128xf32>
    %15 = vector.extract_strided_slice %5 {offsets = [0, 0], sizes = [8, 128], strides = [1, 1]} : vector<64x128xf32> to vector<8x128xf32>
    %cst_9 = arith.constant dense<0.000000e+00> : vector<8x128xf32>
    %16 = tpu.matmul %13, %6, %cst_9 {dimension_numbers = #tpu.dot_dimension_numbers<[1], [0], [0], [1], [0, 0, 1, 1], [], []>} : vector<8x128xf32>, vector<128x128xf32>, vector<8x128xf32> -> vector<8x128xf32>
    %17 = arith.addf %15, %16 : vector<8x128xf32>
    %18 = math.tanh %17 : vector<8x128xf32>
    %19 = arith.negf %17 : vector<8x128xf32>
    %20 = math.exp %19 : vector<8x128xf32>
    %cst_10 = arith.constant 1.000000e+00 : f32
    %21 = vector.broadcast %cst_10 : f32 to vector<8x128xf32>
    %22 = arith.addf %21, %20 : vector<8x128xf32>
    %23 = arith.divf %21, %22 : vector<8x128xf32>
    %24 = arith.select %12, %18, %23 : vector<8x128xi1>, vector<8x128xf32>
    %c96_i32_11 = arith.constant 96 : i32
    %25 = tpu.dynamic_rotate %24 by %c96_i32_11 dim 1 : vector<8x128xf32>, i32 -> vector<8x128xf32>
    %c64_i32_12 = arith.constant 64 : i32
    %26 = tpu.dynamic_rotate %24 by %c64_i32_12 dim 1 : vector<8x128xf32>, i32 -> vector<8x128xf32>
    %c32_i32 = arith.constant 32 : i32
    %27 = tpu.dynamic_rotate %24 by %c32_i32 dim 1 : vector<8x128xf32>, i32 -> vector<8x128xf32>
    %28 = arith.mulf %25, %14 : vector<8x128xf32>
    %29 = arith.mulf %24, %26 : vector<8x128xf32>
    %30 = arith.addf %28, %29 : vector<8x128xf32>
    %31 = math.tanh %30 : vector<8x128xf32>
    %32 = arith.mulf %27, %31 : vector<8x128xf32>
    %33 = vector.extract_strided_slice %5 {offsets = [8, 0], sizes = [8, 128], strides = [1, 1]} : vector<64x128xf32> to vector<8x128xf32>
    %cst_13 = arith.constant dense<0.000000e+00> : vector<8x128xf32>
    %34 = tpu.matmul %32, %6, %cst_13 {dimension_numbers = #tpu.dot_dimension_numbers<[1], [0], [0], [1], [0, 0, 1, 1], [], []>} : vector<8x128xf32>, vector<128x128xf32>, vector<8x128xf32> -> vector<8x128xf32>
    %35 = arith.addf %33, %34 : vector<8x128xf32>
    %36 = math.tanh %35 : vector<8x128xf32>
    %37 = arith.negf %35 : vector<8x128xf32>
    %38 = math.exp %37 : vector<8x128xf32>
    %cst_14 = arith.constant 1.000000e+00 : f32
    %39 = vector.broadcast %cst_14 : f32 to vector<8x128xf32>
    %40 = arith.addf %39, %38 : vector<8x128xf32>
    %41 = arith.divf %39, %40 : vector<8x128xf32>
    %42 = arith.select %12, %36, %41 : vector<8x128xi1>, vector<8x128xf32>
    %c96_i32_15 = arith.constant 96 : i32
    %43 = tpu.dynamic_rotate %42 by %c96_i32_15 dim 1 : vector<8x128xf32>, i32 -> vector<8x128xf32>
    %c64_i32_16 = arith.constant 64 : i32
    %44 = tpu.dynamic_rotate %42 by %c64_i32_16 dim 1 : vector<8x128xf32>, i32 -> vector<8x128xf32>
    %c32_i32_17 = arith.constant 32 : i32
    %45 = tpu.dynamic_rotate %42 by %c32_i32_17 dim 1 : vector<8x128xf32>, i32 -> vector<8x128xf32>
    %46 = arith.mulf %43, %30 : vector<8x128xf32>
    %47 = arith.mulf %42, %44 : vector<8x128xf32>
    %48 = arith.addf %46, %47 : vector<8x128xf32>
    %49 = math.tanh %48 : vector<8x128xf32>
    %50 = arith.mulf %45, %49 : vector<8x128xf32>
    %51 = vector.extract_strided_slice %5 {offsets = [16, 0], sizes = [8, 128], strides = [1, 1]} : vector<64x128xf32> to vector<8x128xf32>
    %cst_18 = arith.constant dense<0.000000e+00> : vector<8x128xf32>
    %52 = tpu.matmul %50, %6, %cst_18 {dimension_numbers = #tpu.dot_dimension_numbers<[1], [0], [0], [1], [0, 0, 1, 1], [], []>} : vector<8x128xf32>, vector<128x128xf32>, vector<8x128xf32> -> vector<8x128xf32>
    %53 = arith.addf %51, %52 : vector<8x128xf32>
    %54 = math.tanh %53 : vector<8x128xf32>
    %55 = arith.negf %53 : vector<8x128xf32>
    %56 = math.exp %55 : vector<8x128xf32>
    %cst_19 = arith.constant 1.000000e+00 : f32
    %57 = vector.broadcast %cst_19 : f32 to vector<8x128xf32>
    %58 = arith.addf %57, %56 : vector<8x128xf32>
    %59 = arith.divf %57, %58 : vector<8x128xf32>
    %60 = arith.select %12, %54, %59 : vector<8x128xi1>, vector<8x128xf32>
    %c96_i32_20 = arith.constant 96 : i32
    %61 = tpu.dynamic_rotate %60 by %c96_i32_20 dim 1 : vector<8x128xf32>, i32 -> vector<8x128xf32>
    %c64_i32_21 = arith.constant 64 : i32
    %62 = tpu.dynamic_rotate %60 by %c64_i32_21 dim 1 : vector<8x128xf32>, i32 -> vector<8x128xf32>
    %c32_i32_22 = arith.constant 32 : i32
    %63 = tpu.dynamic_rotate %60 by %c32_i32_22 dim 1 : vector<8x128xf32>, i32 -> vector<8x128xf32>
    %64 = arith.mulf %61, %48 : vector<8x128xf32>
    %65 = arith.mulf %60, %62 : vector<8x128xf32>
    %66 = arith.addf %64, %65 : vector<8x128xf32>
    %67 = math.tanh %66 : vector<8x128xf32>
    %68 = arith.mulf %63, %67 : vector<8x128xf32>
    %69 = vector.extract_strided_slice %5 {offsets = [24, 0], sizes = [8, 128], strides = [1, 1]} : vector<64x128xf32> to vector<8x128xf32>
    %cst_23 = arith.constant dense<0.000000e+00> : vector<8x128xf32>
    %70 = tpu.matmul %68, %6, %cst_23 {dimension_numbers = #tpu.dot_dimension_numbers<[1], [0], [0], [1], [0, 0, 1, 1], [], []>} : vector<8x128xf32>, vector<128x128xf32>, vector<8x128xf32> -> vector<8x128xf32>
    %71 = arith.addf %69, %70 : vector<8x128xf32>
    %72 = math.tanh %71 : vector<8x128xf32>
    %73 = arith.negf %71 : vector<8x128xf32>
    %74 = math.exp %73 : vector<8x128xf32>
    %cst_24 = arith.constant 1.000000e+00 : f32
    %75 = vector.broadcast %cst_24 : f32 to vector<8x128xf32>
    %76 = arith.addf %75, %74 : vector<8x128xf32>
    %77 = arith.divf %75, %76 : vector<8x128xf32>
    %78 = arith.select %12, %72, %77 : vector<8x128xi1>, vector<8x128xf32>
    %c96_i32_25 = arith.constant 96 : i32
    %79 = tpu.dynamic_rotate %78 by %c96_i32_25 dim 1 : vector<8x128xf32>, i32 -> vector<8x128xf32>
    %c64_i32_26 = arith.constant 64 : i32
    %80 = tpu.dynamic_rotate %78 by %c64_i32_26 dim 1 : vector<8x128xf32>, i32 -> vector<8x128xf32>
    %c32_i32_27 = arith.constant 32 : i32
    %81 = tpu.dynamic_rotate %78 by %c32_i32_27 dim 1 : vector<8x128xf32>, i32 -> vector<8x128xf32>
    %82 = arith.mulf %79, %66 : vector<8x128xf32>
    %83 = arith.mulf %78, %80 : vector<8x128xf32>
    %84 = arith.addf %82, %83 : vector<8x128xf32>
    %85 = math.tanh %84 : vector<8x128xf32>
    %86 = arith.mulf %81, %85 : vector<8x128xf32>
    %87 = vector.extract_strided_slice %5 {offsets = [32, 0], sizes = [8, 128], strides = [1, 1]} : vector<64x128xf32> to vector<8x128xf32>
    %cst_28 = arith.constant dense<0.000000e+00> : vector<8x128xf32>
    %88 = tpu.matmul %86, %6, %cst_28 {dimension_numbers = #tpu.dot_dimension_numbers<[1], [0], [0], [1], [0, 0, 1, 1], [], []>} : vector<8x128xf32>, vector<128x128xf32>, vector<8x128xf32> -> vector<8x128xf32>
    %89 = arith.addf %87, %88 : vector<8x128xf32>
    %90 = math.tanh %89 : vector<8x128xf32>
    %91 = arith.negf %89 : vector<8x128xf32>
    %92 = math.exp %91 : vector<8x128xf32>
    %cst_29 = arith.constant 1.000000e+00 : f32
    %93 = vector.broadcast %cst_29 : f32 to vector<8x128xf32>
    %94 = arith.addf %93, %92 : vector<8x128xf32>
    %95 = arith.divf %93, %94 : vector<8x128xf32>
    %96 = arith.select %12, %90, %95 : vector<8x128xi1>, vector<8x128xf32>
    %c96_i32_30 = arith.constant 96 : i32
    %97 = tpu.dynamic_rotate %96 by %c96_i32_30 dim 1 : vector<8x128xf32>, i32 -> vector<8x128xf32>
    %c64_i32_31 = arith.constant 64 : i32
    %98 = tpu.dynamic_rotate %96 by %c64_i32_31 dim 1 : vector<8x128xf32>, i32 -> vector<8x128xf32>
    %c32_i32_32 = arith.constant 32 : i32
    %99 = tpu.dynamic_rotate %96 by %c32_i32_32 dim 1 : vector<8x128xf32>, i32 -> vector<8x128xf32>
    %100 = arith.mulf %97, %84 : vector<8x128xf32>
    %101 = arith.mulf %96, %98 : vector<8x128xf32>
    %102 = arith.addf %100, %101 : vector<8x128xf32>
    %103 = math.tanh %102 : vector<8x128xf32>
    %104 = arith.mulf %99, %103 : vector<8x128xf32>
    %105 = vector.extract_strided_slice %5 {offsets = [40, 0], sizes = [8, 128], strides = [1, 1]} : vector<64x128xf32> to vector<8x128xf32>
    %cst_33 = arith.constant dense<0.000000e+00> : vector<8x128xf32>
    %106 = tpu.matmul %104, %6, %cst_33 {dimension_numbers = #tpu.dot_dimension_numbers<[1], [0], [0], [1], [0, 0, 1, 1], [], []>} : vector<8x128xf32>, vector<128x128xf32>, vector<8x128xf32> -> vector<8x128xf32>
    %107 = arith.addf %105, %106 : vector<8x128xf32>
    %108 = math.tanh %107 : vector<8x128xf32>
    %109 = arith.negf %107 : vector<8x128xf32>
    %110 = math.exp %109 : vector<8x128xf32>
    %cst_34 = arith.constant 1.000000e+00 : f32
    %111 = vector.broadcast %cst_34 : f32 to vector<8x128xf32>
    %112 = arith.addf %111, %110 : vector<8x128xf32>
    %113 = arith.divf %111, %112 : vector<8x128xf32>
    %114 = arith.select %12, %108, %113 : vector<8x128xi1>, vector<8x128xf32>
    %c96_i32_35 = arith.constant 96 : i32
    %115 = tpu.dynamic_rotate %114 by %c96_i32_35 dim 1 : vector<8x128xf32>, i32 -> vector<8x128xf32>
    %c64_i32_36 = arith.constant 64 : i32
    %116 = tpu.dynamic_rotate %114 by %c64_i32_36 dim 1 : vector<8x128xf32>, i32 -> vector<8x128xf32>
    %c32_i32_37 = arith.constant 32 : i32
    %117 = tpu.dynamic_rotate %114 by %c32_i32_37 dim 1 : vector<8x128xf32>, i32 -> vector<8x128xf32>
    %118 = arith.mulf %115, %102 : vector<8x128xf32>
    %119 = arith.mulf %114, %116 : vector<8x128xf32>
    %120 = arith.addf %118, %119 : vector<8x128xf32>
    %121 = math.tanh %120 : vector<8x128xf32>
    %122 = arith.mulf %117, %121 : vector<8x128xf32>
    %123 = vector.extract_strided_slice %5 {offsets = [48, 0], sizes = [8, 128], strides = [1, 1]} : vector<64x128xf32> to vector<8x128xf32>
    %cst_38 = arith.constant dense<0.000000e+00> : vector<8x128xf32>
    %124 = tpu.matmul %122, %6, %cst_38 {dimension_numbers = #tpu.dot_dimension_numbers<[1], [0], [0], [1], [0, 0, 1, 1], [], []>} : vector<8x128xf32>, vector<128x128xf32>, vector<8x128xf32> -> vector<8x128xf32>
    %125 = arith.addf %123, %124 : vector<8x128xf32>
    %126 = math.tanh %125 : vector<8x128xf32>
    %127 = arith.negf %125 : vector<8x128xf32>
    %128 = math.exp %127 : vector<8x128xf32>
    %cst_39 = arith.constant 1.000000e+00 : f32
    %129 = vector.broadcast %cst_39 : f32 to vector<8x128xf32>
    %130 = arith.addf %129, %128 : vector<8x128xf32>
    %131 = arith.divf %129, %130 : vector<8x128xf32>
    %132 = arith.select %12, %126, %131 : vector<8x128xi1>, vector<8x128xf32>
    %c96_i32_40 = arith.constant 96 : i32
    %133 = tpu.dynamic_rotate %132 by %c96_i32_40 dim 1 : vector<8x128xf32>, i32 -> vector<8x128xf32>
    %c64_i32_41 = arith.constant 64 : i32
    %134 = tpu.dynamic_rotate %132 by %c64_i32_41 dim 1 : vector<8x128xf32>, i32 -> vector<8x128xf32>
    %c32_i32_42 = arith.constant 32 : i32
    %135 = tpu.dynamic_rotate %132 by %c32_i32_42 dim 1 : vector<8x128xf32>, i32 -> vector<8x128xf32>
    %136 = arith.mulf %133, %120 : vector<8x128xf32>
    %137 = arith.mulf %132, %134 : vector<8x128xf32>
    %138 = arith.addf %136, %137 : vector<8x128xf32>
    %139 = math.tanh %138 : vector<8x128xf32>
    %140 = arith.mulf %135, %139 : vector<8x128xf32>
    %141 = vector.extract_strided_slice %5 {offsets = [56, 0], sizes = [8, 128], strides = [1, 1]} : vector<64x128xf32> to vector<8x128xf32>
    %cst_43 = arith.constant dense<0.000000e+00> : vector<8x128xf32>
    %142 = tpu.matmul %140, %6, %cst_43 {dimension_numbers = #tpu.dot_dimension_numbers<[1], [0], [0], [1], [0, 0, 1, 1], [], []>} : vector<8x128xf32>, vector<128x128xf32>, vector<8x128xf32> -> vector<8x128xf32>
    %143 = arith.addf %141, %142 : vector<8x128xf32>
    %144 = math.tanh %143 : vector<8x128xf32>
    %145 = arith.negf %143 : vector<8x128xf32>
    %146 = math.exp %145 : vector<8x128xf32>
    %cst_44 = arith.constant 1.000000e+00 : f32
    %147 = vector.broadcast %cst_44 : f32 to vector<8x128xf32>
    %148 = arith.addf %147, %146 : vector<8x128xf32>
    %149 = arith.divf %147, %148 : vector<8x128xf32>
    %150 = arith.select %12, %144, %149 : vector<8x128xi1>, vector<8x128xf32>
    %c96_i32_45 = arith.constant 96 : i32
    %151 = tpu.dynamic_rotate %150 by %c96_i32_45 dim 1 : vector<8x128xf32>, i32 -> vector<8x128xf32>
    %c64_i32_46 = arith.constant 64 : i32
    %152 = tpu.dynamic_rotate %150 by %c64_i32_46 dim 1 : vector<8x128xf32>, i32 -> vector<8x128xf32>
    %c32_i32_47 = arith.constant 32 : i32
    %153 = tpu.dynamic_rotate %150 by %c32_i32_47 dim 1 : vector<8x128xf32>, i32 -> vector<8x128xf32>
    %154 = arith.mulf %151, %138 : vector<8x128xf32>
    %155 = arith.mulf %150, %152 : vector<8x128xf32>
    %156 = arith.addf %154, %155 : vector<8x128xf32>
    %157 = math.tanh %156 : vector<8x128xf32>
    %158 = arith.mulf %153, %157 : vector<8x128xf32>
    %c0_48 = arith.constant 0 : index
    %c0_49 = arith.constant 0 : index
    %159 = vector.load %arg4[%c0_48, %c0_49] : memref<128x128xf32, #tpu.memory_space<vmem>>, vector<128x128xf32>
    %cst_50 = arith.constant dense<0.000000e+00> : vector<8x128xf32>
    %160 = tpu.matmul %158, %159, %cst_50 {dimension_numbers = #tpu.dot_dimension_numbers<[1], [0], [0], [1], [0, 0, 1, 1], [], []>} : vector<8x128xf32>, vector<128x128xf32>, vector<8x128xf32> -> vector<8x128xf32>
    %c0_51 = arith.constant 0 : index
    %c0_52 = arith.constant 0 : index
    %161 = vector.load %arg5[%c0_51, %c0_52] : memref<1x128xf32, #tpu.memory_space<vmem>>, vector<1x128xf32>
    %162 = vector.broadcast %161 : vector<1x128xf32> to vector<8x128xf32>
    %163 = arith.addf %160, %162 : vector<8x128xf32>
    %cst_53 = arith.constant 0.000000e+00 : f32
    %164 = vector.broadcast %cst_53 : f32 to vector<8x128xf32>
    %165 = arith.maximumf %163, %164 : vector<8x128xf32>
    %c0_54 = arith.constant 0 : index
    %c0_55 = arith.constant 0 : index
    %166 = vector.load %arg6[%c0_54, %c0_55] : memref<128x128xf32, #tpu.memory_space<vmem>>, vector<128x128xf32>
    %cst_56 = arith.constant dense<0.000000e+00> : vector<8x128xf32>
    %167 = tpu.matmul %165, %166, %cst_56 {dimension_numbers = #tpu.dot_dimension_numbers<[1], [0], [0], [1], [0, 0, 1, 1], [], []>} : vector<8x128xf32>, vector<128x128xf32>, vector<8x128xf32> -> vector<8x128xf32>
    %c0_57 = arith.constant 0 : index
    %c0_58 = arith.constant 0 : index
    %168 = vector.load %arg7[%c0_57, %c0_58] : memref<1x128xf32, #tpu.memory_space<vmem>>, vector<1x128xf32>
    %169 = vector.broadcast %168 : vector<1x128xf32> to vector<8x128xf32>
    %170 = arith.addf %167, %169 : vector<8x128xf32>
    %c0_59 = arith.constant 0 : index
    %c0_60 = arith.constant 0 : index
    %171 = vector.load %arg8[%c0_59, %c0_60] : memref<8x128xf32, #tpu.memory_space<vmem>>, vector<8x128xf32>
    tpu.vector_store %arg8[%c0_59, %c0_60], %170 {strides = array<i32>} : memref<8x128xf32, #tpu.memory_space<vmem>>, vector<8x128xf32>,
    return
  }
}

</mosaic_0001>

<llo_original>
// kernel: tpu_custom_call.1
$region0: #{tpu_custom_call.1}
  #allocation0 [shape = 'u32[]', space=smem, size = 0x4, offset = 0x4, fixed_abs, tag = 'smem constant byte address 0x4 - core index']
  #allocation1 [shape = 'u32[144,128]{1,0:T(1,128)}', space=vmem, size = 0x12000, scoped, tag = 'internal scratch']
  %s0 = inlined_call_operand.vmem [shape: f32[64,16], index: 0, kind: input, shape index: {}]
  %s1 = inlined_call_operand.vmem [shape: f32[16,128], index: 1, kind: input, shape index: {}]
  %s2 = inlined_call_operand.vmem [shape: f32[1,128], index: 2, kind: input, shape index: {}]
  %s3 = inlined_call_operand.hbm [shape: f32[128,128], index: 3, kind: input, shape index: {}]
  %s4 = inlined_call_operand.hbm [shape: f32[128,128], index: 4, kind: input, shape index: {}]
  %s5 = inlined_call_operand.vmem [shape: f32[1,128], index: 5, kind: input, shape index: {}]
  %s6 = inlined_call_operand.hbm [shape: f32[128,128], index: 6, kind: input, shape index: {}]
  %s7 = inlined_call_operand.vmem [shape: f32[1,128], index: 7, kind: input, shape index: {}]
  %s8 = inlined_call_operand.hbm [shape: f32[8,128], index: 8, kind: output, shape index: {}]
  %s9 = sld [smem:[#allocation0]]
  $region54: #{tpu_custom_call.1} parent=0
    _
  %s11 = ssub.s32 1, %s9
  %s12 = scalar_select 0, %s11, %s9
  $region1: #{tpu_custom_call.1} parent=0
    #allocation2 [shape = 'u8[65536]{0}', space=vmem, size = 0x10000, scoped, tag = 'input window, operand 3, single buffered']
    #allocation3 [shape = 's32[1]{0}', space=sflag, size = 0x4, scoped, tag = 'scoped memory for tpu_custom_call.1']
    #allocation4 [shape = 's32[1]{0}', space=sflag, size = 0x4, scoped, tag = 'scoped memory for tpu_custom_call.1']
    #allocation5 [shape = 'u8[65536]{0}', space=vmem, size = 0x10000, scoped, tag = 'input window, operand 4, single buffered']
    #allocation6 [shape = 's32[1]{0}', space=sflag, size = 0x4, scoped, tag = 'scoped memory for tpu_custom_call.1']
    #allocation7 [shape = 'u8[65536]{0}', space=vmem, size = 0x10000, scoped, tag = 'input window, operand 6, single buffered']
    #allocation8 [shape = 'u8[4096]{0}', space=vmem, size = 0x1000, scoped, tag = 'output window, operand 0, single buffered']
    %13 = vsyncpa [#allocation3], 0
    %14 = vsyncpa [#allocation6], 0
    %15 = vsyncpa [#allocation4], 0
    // Predicated region
    $region2: #{tpu_custom_call.1} parent=1 // pred_check
      _
    $region3: #{tpu_custom_call.1} parent=1 // pred_check_branch
      %17 = sbr.rel (0) target = $region5
    $region4: #{tpu_custom_call.1} parent=1 // pred_region
      _
    $region5: #{tpu_custom_call.1} parent=1 // pred_fallthru
      _
    // Predicated region
    $region6: #{tpu_custom_call.1} parent=1 // pred_check
      _
    $region7: #{tpu_custom_call.1} parent=1 // pred_check_branch
      %19 = sbr.rel (0) target = $region9
    $region8: #{tpu_custom_call.1} parent=1 // pred_region
      _
    $region9: #{tpu_custom_call.1} parent=1 // pred_fallthru
      _
    // Predicated region
    $region10: #{tpu_custom_call.1} parent=1 // pred_check
      _
    $region11: #{tpu_custom_call.1} parent=1 // pred_check_branch
      %21 = sbr.rel (0) target = $region13
    $region12: #{tpu_custom_call.1} parent=1 // pred_region
      _
    $region13: #{tpu_custom_call.1} parent=1 // pred_fallthru
      _
    // Predicated region
    $region14: #{tpu_custom_call.1} parent=1 // pred_check
      _
    $region15: #{tpu_custom_call.1} parent=1 // pred_check_branch
      %23 = sbr.rel (0) target = $region17
    $region16: #{tpu_custom_call.1} parent=1 // pred_region
      %s25 = ssub.s32 2048, 2048
      %26 = vsyncadd [#allocation3], %s25
      %s27 = sshll.u32 [#allocation2], 4
      %s28 = int_to_ptr.vmem [resolvable:$true] %s27
      %33 = dma.hbm_to_vmem [thread:$0]  %s3, 2048, %s28, [#allocation3], 128, 128, 8
    $region17: #{tpu_custom_call.1} parent=1 // pred_fallthru
      _
    // Predicated region
    $region18: #{tpu_custom_call.1} parent=1 // pred_check
      _
    $region19: #{tpu_custom_call.1} parent=1 // pred_check_branch
      %35 = sbr.rel (0) target = $region21
    $region20: #{tpu_custom_call.1} parent=1 // pred_region
      %s37 = ssub.s32 2048, 2048
      %38 = vsyncadd [#allocation6], %s37
      %s39 = sshll.u32 [#allocation5], 4
      %s40 = int_to_ptr.vmem [resolvable:$true] %s39
      %45 = dma.hbm_to_vmem [thread:$0]  %s4, 2048, %s40, [#allocation6], 128, 128, 8
    $region21: #{tpu_custom_call.1} parent=1 // pred_fallthru
      _
    // Predicated region
    $region22: #{tpu_custom_call.1} parent=1 // pred_check
      _
    $region23: #{tpu_custom_call.1} parent=1 // pred_check_branch
      %47 = sbr.rel (0) target = $region25
    $region24: #{tpu_custom_call.1} parent=1 // pred_region
      _
    $region25: #{tpu_custom_call.1} parent=1 // pred_fallthru
      _
    // Predicated region
    $region26: #{tpu_custom_call.1} parent=1 // pred_check
      _
    $region27: #{tpu_custom_call.1} parent=1 // pred_check_branch
      %49 = sbr.rel (0) target = $region29
    $region28: #{tpu_custom_call.1} parent=1 // pred_region
      %s51 = ssub.s32 2048, 2048
      %52 = vsyncadd [#allocation6], %s51
      %s53 = sshll.u32 [#allocation7], 4
      %s54 = int_to_ptr.vmem [resolvable:$true] %s53
      %59 = dma.hbm_to_vmem [thread:$0]  %s6, 2048, %s54, [#allocation6], 128, 128, 8
    $region29: #{tpu_custom_call.1} parent=1 // pred_fallthru
      _
    // Predicated region
    $region30: #{tpu_custom_call.1} parent=1 // pred_check
      _
    $region31: #{tpu_custom_call.1} parent=1 // pred_check_branch
      %61 = sbr.rel (0) target = $region33
    $region32: #{tpu_custom_call.1} parent=1 // pred_region
      _
    $region33: #{tpu_custom_call.1} parent=1 // pred_fallthru
      _
    // Predicated region
    $region34: #{tpu_custom_call.1} parent=1 // pred_check
      _
    $region35: #{tpu_custom_call.1} parent=1 // pred_check_branch
      %63 = sbr.rel (0) target = $region37
    $region36: #{tpu_custom_call.1} parent=1 // pred_region
      %64 = dma.done [#allocation3], 2048
    $region37: #{tpu_custom_call.1} parent=1 // pred_fallthru
      _
    // Predicated region
    $region38: #{tpu_custom_call.1} parent=1 // pred_check
      _
    $region39: #{tpu_custom_call.1} parent=1 // pred_check_branch
      %66 = sbr.rel (0) target = $region41
    $region40: #{tpu_custom_call.1} parent=1 // pred_region
      %67 = dma.done [#allocation6], 2048
    $region41: #{tpu_custom_call.1} parent=1 // pred_fallthru
      _
    // Predicated region
    $region42: #{tpu_custom_call.1} parent=1 // pred_check
      _
    $region43: #{tpu_custom_call.1} parent=1 // pred_check_branch
      %69 = sbr.rel (0) target = $region45
    $region44: #{tpu_custom_call.1} parent=1 // pred_region
      %70 = dma.done [#allocation6], 2048
    $region45: #{tpu_custom_call.1} parent=1 // pred_fallthru
      _
    %v71 = vld [vmem:[%s0] sm:$0xff]
    %v72 = vld [vmem:[%s0 + $0x8] sm:$0xff]
    %v73 = vld [vmem:[%s0 + $0x10] sm:$0xff]
    %v74 = vld [vmem:[%s0 + $0x18] sm:$0xff]
    %v75 = vld [vmem:[%s0 + $0x20] sm:$0xff]
    %v76 = vld [vmem:[%s0 + $0x28] sm:$0xff]
    %v77 = vld [vmem:[%s0 + $0x30] sm:$0xff]
    %v78 = vld [vmem:[%s0 + $0x38] sm:$0xff]
    %v79 = vld [vmem:[%s1] sm:$0xff]
    %v80 = vld [vmem:[%s1 + $0x8] sm:$0xff]
    %v81 = vld [vmem:[%s2] sm:$0x1]
    %v83 = vlaneseq
    %v84 = vshrl.u32 %v83, 7
    %v85 = vsub.s32 0, %v84
    %v86 = vrot.slane %v81, %v85
    %vm88 = vcmask 130048
    %v90 = vsel %vm88, %v71, 0
    %v93 = vsel %vm88, %v72, 0
    %v96 = vsel %vm88, %v73, 0
    %v99 = vsel %vm88, %v74, 0
    %v102 = vsel %vm88, %v75, 0
    %v105 = vsel %vm88, %v76, 0
    %v108 = vsel %vm88, %v77, 0
    %v111 = vsel %vm88, %v78, 0
    %113 = vmatprep.subr.mxu0 0.0
    %114 = vmatpush1.msra.mxu0 %v79
    %115 = vmatprep.subr.mxu0 0.0
    %116 = vmatpush1.msra.mxu0 %v80
    %117 = vmatprep.subr.mxu0 0.0
    %118 = vmatpush1.msra.mxu0 0.0
    %119 = vmatprep.subr.mxu0 0.0
    %120 = vmatpush1.msra.mxu0 0.0
    %121 = vmatprep.subr.mxu0 0.0
    %122 = vmatpush1.msra.mxu0 0.0
    %123 = vmatprep.subr.mxu0 0.0
    %124 = vmatpush1.msra.mxu0 0.0
    %125 = vmatprep.subr.mxu0 0.0
    %126 = vmatpush1.msra.mxu0 0.0
    %127 = vmatprep.subr.mxu0 0.0
    %128 = vmatpush1.msra.mxu0 0.0
    %129 = vmatprep.subr.mxu0 0.0
    %130 = vmatpush1.msra.mxu0 0.0
    %131 = vmatprep.subr.mxu0 0.0
    %132 = vmatpush1.msra.mxu0 0.0
    %133 = vmatprep.subr.mxu0 0.0
    %134 = vmatpush1.msra.mxu0 0.0
    %135 = vmatprep.subr.mxu0 0.0
    %136 = vmatpush1.msra.mxu0 0.0
    %137 = vmatprep.subr.mxu0 0.0
    %138 = vmatpush1.msra.mxu0 0.0
    %139 = vmatprep.subr.mxu0 0.0
    %140 = vmatpush1.msra.mxu0 0.0
    %141 = vmatprep.subr.mxu0 0.0
    %142 = vmatpush1.msra.mxu0 0.0
    %143 = vmatprep.subr.mxu0 0.0
    %144 = vmatpush1.msra.mxu0 0.0
    %145 = vmatprep.subr.mxu0 0.0
    %146 = vmatpush1.msra.mxu0 0.0
    %147 = vmatprep.subr.mxu0 0.0
    %148 = vmatpush1.msra.mxu0 0.0
    %149 = vmatprep.subr.mxu0 0.0
    %150 = vmatpush1.msra.mxu0 0.0
    %151 = vmatprep.subr.mxu0 0.0
    %152 = vmatpush1.msra.mxu0 0.0
    %153 = vmatprep.subr.mxu0 0.0
    %154 = vmatpush1.msra.mxu0 0.0
    %155 = vmatprep.subr.mxu0 0.0
    %156 = vmatpush1.msra.mxu0 0.0
    %157 = vmatprep.subr.mxu0 0.0
    %158 = vmatpush1.msra.mxu0 0.0
    %159 = vmatprep.subr.mxu0 0.0
    %160 = vmatpush1.msra.mxu0 0.0
    %161 = vmatprep.subr.mxu0 0.0
    %162 = vmatpush1.msra.mxu0 0.0
    %163 = vmatprep.subr.mxu0 0.0
    %164 = vmatpush1.msra.mxu0 0.0
    %165 = vmatprep.subr.mxu0 0.0
    %166 = vmatpush1.msra.mxu0 0.0
    %167 = vmatprep.subr.mxu0 0.0
    %168 = vmatpush1.msra.mxu0 0.0
    %169 = vmatprep.subr.mxu0 0.0
    %170 = vmatpush1.msra.mxu0 0.0
    %171 = vmatprep.subr.mxu0 0.0
    %172 = vmatpush1.msra.mxu0 0.0
    %173 = vmatprep.subr.mxu0 0.0
    %174 = vmatpush1.msra.mxu0 0.0
    %175 = vmatprep.subr.mxu0 0.0
    %176 = vmatpush1.msra.mxu0 0.0
    %177 = vmatprep.mubr.f32.mxu0 0.0
    %178 = vmatmul.mubr.f32.gmra.mrb[0].mxu0 %v90
    %v179 = vpop.f32.mrb[0].mxu0
    %v180 = vadd.f32 %v86, %v179
    %v181 = vpop.f32.mrb[0].mxu0
    %182 = vmatprep.mubr.f32.mxu0 0.0
    %183 = vmatmul.mubr.f32.gmra.mrb[0].mxu0 %v93
    %v184 = vpop.f32.mrb[0].mxu0
    %v185 = vadd.f32 %v86, %v184
    %v186 = vpop.f32.mrb[0].mxu0
    %187 = vmatprep.mubr.f32.mxu0 0.0
    %188 = vmatmul.mubr.f32.gmra.mrb[0].mxu0 %v96
    %v189 = vpop.f32.mrb[0].mxu0
    %v190 = vadd.f32 %v86, %v189
    %v191 = vpop.f32.mrb[0].mxu0
    %192 = vmatprep.mubr.f32.mxu0 0.0
    %193 = vmatmul.mubr.f32.gmra.mrb[0].mxu0 %v99
    %v194 = vpop.f32.mrb[0].mxu0
    %v195 = vadd.f32 %v86, %v194
    %v196 = vpop.f32.mrb[0].mxu0
    %197 = vmatprep.mubr.f32.mxu0 0.0
    %198 = vmatmul.mubr.f32.gmra.mrb[0].mxu0 %v102
    %v199 = vpop.f32.mrb[0].mxu0
    %v200 = vadd.f32 %v86, %v199
    %v201 = vpop.f32.mrb[0].mxu0
    %202 = vmatprep.mubr.f32.mxu0 0.0
    %203 = vmatmul.mubr.f32.gmra.mrb[0].mxu0 %v105
    %v204 = vpop.f32.mrb[0].mxu0
    %v205 = vadd.f32 %v86, %v204
    %v206 = vpop.f32.mrb[0].mxu0
    %207 = vmatprep.mubr.f32.mxu0 0.0
    %208 = vmatmul.mubr.f32.gmra.mrb[0].mxu0 %v108
    %v209 = vpop.f32.mrb[0].mxu0
    %v210 = vadd.f32 %v86, %v209
    %v211 = vpop.f32.mrb[0].mxu0
    %212 = vmatprep.mubr.f32.mxu0 0.0
    %213 = vmatmul.mubr.f32.gmra.mrb[0].mxu0 %v111
    %v214 = vpop.f32.mrb[0].mxu0
    %v215 = vadd.f32 %v86, %v214
    %v216 = vpop.f32.mrb[0].mxu0
    %217 = vdwg.mxu0
    %v218 = vld [vmem:[#allocation2] sm:$0xff]
    %v219 = vld [vmem:[#allocation2 + $0x8] sm:$0xff]
    %v220 = vld [vmem:[#allocation2 + $0x10] sm:$0xff]
    %v221 = vld [vmem:[#allocation2 + $0x18] sm:$0xff]
    %v222 = vld [vmem:[#allocation2 + $0x20] sm:$0xff]
    %v223 = vld [vmem:[#allocation2 + $0x28] sm:$0xff]
    %v224 = vld [vmem:[#allocation2 + $0x30] sm:$0xff]
    %v225 = vld [vmem:[#allocation2 + $0x38] sm:$0xff]
    %v226 = vld [vmem:[#allocation2 + $0x40] sm:$0xff]
    %v227 = vld [vmem:[#allocation2 + $0x48] sm:$0xff]
    %v228 = vld [vmem:[#allocation2 + $0x50] sm:$0xff]
    %v229 = vld [vmem:[#allocation2 + $0x58] sm:$0xff]
    %v230 = vld [vmem:[#allocation2 + $0x60] sm:$0xff]
    %v231 = vld [vmem:[#allocation2 + $0x68] sm:$0xff]
    %v232 = vld [vmem:[#allocation2 + $0x70] sm:$0xff]
    %v233 = vld [vmem:[#allocation2 + $0x78] sm:$0xff]
    %v234 = vlaneseq
    %v235 = vand.u32 %v234, 127
    %vm236 = vcmp.ge.s32.totalorder %v235, 64
    %vm237 = vcmp.lt.s32.totalorder %v235, 96
    %vm238 = vmand %vm236, %vm237
    %239 = vmatprep.subr.mxu0 0.0
    %240 = vmatpush1.msra.mxu0 %v218
    %241 = vmatprep.subr.mxu0 0.0
    %242 = vmatpush1.msra.mxu0 %v219
    %243 = vmatprep.subr.mxu0 0.0
    %244 = vmatpush1.msra.mxu0 %v220
    %245 = vmatprep.subr.mxu0 0.0
    %246 = vmatpush1.msra.mxu0 %v221
    %247 = vmatprep.subr.mxu0 0.0
    %248 = vmatpush1.msra.mxu0 %v222
    %249 = vmatprep.subr.mxu0 0.0
    %250 = vmatpush1.msra.mxu0 %v223
    %251 = vmatprep.subr.mxu0 0.0
    %252 = vmatpush1.msra.mxu0 %v224
    %253 = vmatprep.subr.mxu0 0.0
    %254 = vmatpush1.msra.mxu0 %v225
    %255 = vmatprep.subr.mxu0 0.0
    %256 = vmatpush1.msra.mxu0 %v226
    %257 = vmatprep.subr.mxu0 0.0
    %258 = vmatpush1.msra.mxu0 %v227
    %259 = vmatprep.subr.mxu0 0.0
    %260 = vmatpush1.msra.mxu0 %v228
    %261 = vmatprep.subr.mxu0 0.0
    %262 = vmatpush1.msra.mxu0 %v229
    %263 = vmatprep.subr.mxu0 0.0
    %264 = vmatpush1.msra.mxu0 %v230
    %265 = vmatprep.subr.mxu0 0.0
    %266 = vmatpush1.msra.mxu0 %v231
    %267 = vmatprep.subr.mxu0 0.0
    %268 = vmatpush1.msra.mxu0 %v232
    %269 = vmatprep.subr.mxu0 0.0
    %270 = vmatpush1.msra.mxu0 %v233
    %271 = vmatprep.subr.mxu0 0.0
    %272 = vmatpush1.msra.mxu0 0.0
    %273 = vmatprep.subr.mxu0 0.0
    %274 = vmatpush1.msra.mxu0 0.0
    %275 = vmatprep.subr.mxu0 0.0
    %276 = vmatpush1.msra.mxu0 0.0
    %277 = vmatprep.subr.mxu0 0.0
    %278 = vmatpush1.msra.mxu0 0.0
    %279 = vmatprep.subr.mxu0 0.0
    %280 = vmatpush1.msra.mxu0 0.0
    %281 = vmatprep.subr.mxu0 0.0
    %282 = vmatpush1.msra.mxu0 0.0
    %283 = vmatprep.subr.mxu0 0.0
    %284 = vmatpush1.msra.mxu0 0.0
    %285 = vmatprep.subr.mxu0 0.0
    %286 = vmatpush1.msra.mxu0 0.0
    %287 = vmatprep.subr.mxu0 0.0
    %288 = vmatpush1.msra.mxu0 0.0
    %289 = vmatprep.subr.mxu0 0.0
    %290 = vmatpush1.msra.mxu0 0.0
    %291 = vmatprep.subr.mxu0 0.0
    %292 = vmatpush1.msra.mxu0 0.0
    %293 = vmatprep.subr.mxu0 0.0
    %294 = vmatpush1.msra.mxu0 0.0
    %295 = vmatprep.subr.mxu0 0.0
    %296 = vmatpush1.msra.mxu0 0.0
    %297 = vmatprep.subr.mxu0 0.0
    %298 = vmatpush1.msra.mxu0 0.0
    %299 = vmatprep.subr.mxu0 0.0
    %300 = vmatpush1.msra.mxu0 0.0
    %301 = vmatprep.subr.mxu0 0.0
    %302 = vmatpush1.msra.mxu0 0.0
    %303 = vmatprep.mubr.f32.mxu0 0.0
    %304 = vmatmul.mubr.f32.gmra.mrb[0].mxu0 0.0
    %v305 = vpop.f32.mrb[0].mxu0
    %v306 = vadd.f32 0.0, %v305
    %v307 = vpop.f32.mrb[0].mxu0
    %308 = vdwg.mxu0
    %v309 = vadd.f32 %v180, %v306
    %v310 = vtanh.pop %v309
    %v311 = vxor.u32 %v309, 2147483648
    %v312 = vmul.f32 %v311, 1.442695
    %v313 = vpow.pop %v312
    %v314 = vadd.f32 %v313, 1.0
    %v315 = vrcp.pop %v314
    %v316 = vmul.f32 1.0, %v315
    %v317 = vsel %vm238, %v310, %v316
    %318 = vrot.lane.b32.xlu0 %v317, 96
    %v319 = vpop.permute.xlu0 %318
    %320 = vrot.lane.b32.xlu0 %v317, 64
    %v321 = vpop.permute.xlu0 %320
    %322 = vrot.lane.b32.xlu0 %v317, 32
    %v323 = vpop.permute.xlu0 %322
    %v324 = vmul.f32 %v319, 0.0
    %v325 = vmul.f32 %v317, %v321
    %v326 = vadd.f32 %v324, %v325
    %v327 = vtanh.pop %v326
    %v328 = vmul.f32 %v323, %v327
    %329 = vmatprep.subr.mxu0 0.0
    %330 = vmatpush1.msra.mxu0 %v218
    %331 = vmatprep.subr.mxu0 0.0
    %332 = vmatpush1.msra.mxu0 %v219
    %333 = vmatprep.subr.mxu0 0.0
    %334 = vmatpush1.msra.mxu0 %v220
    %335 = vmatprep.subr.mxu0 0.0
    %336 = vmatpush1.msra.mxu0 %v221
    %337 = vmatprep.subr.mxu0 0.0
    %338 = vmatpush1.msra.mxu0 %v222
    %339 = vmatprep.subr.mxu0 0.0
    %340 = vmatpush1.msra.mxu0 %v223
    %341 = vmatprep.subr.mxu0 0.0
    %342 = vmatpush1.msra.mxu0 %v224
    %343 = vmatprep.subr.mxu0 0.0
    %344 = vmatpush1.msra.mxu0 %v225
    %345 = vmatprep.subr.mxu0 0.0
    %346 = vmatpush1.msra.mxu0 %v226
    %347 = vmatprep.subr.mxu0 0.0
    %348 = vmatpush1.msra.mxu0 %v227
    %349 = vmatprep.subr.mxu0 0.0
    %350 = vmatpush1.msra.mxu0 %v228
    %351 = vmatprep.subr.mxu0 0.0
    %352 = vmatpush1.msra.mxu0 %v229
    %353 = vmatprep.subr.mxu0 0.0
    %354 = vmatpush1.msra.mxu0 %v230
    %355 = vmatprep.subr.mxu0 0.0
    %356 = vmatpush1.msra.mxu0 %v231
    %357 = vmatprep.subr.mxu0 0.0
    %358 = vmatpush1.msra.mxu0 %v232
    %359 = vmatprep.subr.mxu0 0.0
    %360 = vmatpush1.msra.mxu0 %v233
    %361 = vmatprep.subr.mxu0 0.0
    %362 = vmatpush1.msra.mxu0 0.0
    %363 = vmatprep.subr.mxu0 0.0
    %364 = vmatpush1.msra.mxu0 0.0
    %365 = vmatprep.subr.mxu0 0.0
    %366 = vmatpush1.msra.mxu0 0.0
    %367 = vmatprep.subr.mxu0 0.0
    %368 = vmatpush1.msra.mxu0 0.0
    %369 = vmatprep.subr.mxu0 0.0
    %370 = vmatpush1.msra.mxu0 0.0
    %371 = vmatprep.subr.mxu0 0.0
    %372 = vmatpush1.msra.mxu0 0.0
    %373 = vmatprep.subr.mxu0 0.0
    %374 = vmatpush1.msra.mxu0 0.0
    %375 = vmatprep.subr.mxu0 0.0
    %376 = vmatpush1.msra.mxu0 0.0
    %377 = vmatprep.subr.mxu0 0.0
    %378 = vmatpush1.msra.mxu0 0.0
    %379 = vmatprep.subr.mxu0 0.0
    %380 = vmatpush1.msra.mxu0 0.0
    %381 = vmatprep.subr.mxu0 0.0
    %382 = vmatpush1.msra.mxu0 0.0
    %383 = vmatprep.subr.mxu0 0.0
    %384 = vmatpush1.msra.mxu0 0.0
    %385 = vmatprep.subr.mxu0 0.0
    %386 = vmatpush1.msra.mxu0 0.0
    %387 = vmatprep.subr.mxu0 0.0
    %388 = vmatpush1.msra.mxu0 0.0
    %389 = vmatprep.subr.mxu0 0.0
    %390 = vmatpush1.msra.mxu0 0.0
    %391 = vmatprep.subr.mxu0 0.0
    %392 = vmatpush1.msra.mxu0 0.0
    %393 = vmatprep.mubr.f32.mxu0 0.0
    %394 = vmatmul.mubr.f32.gmra.mrb[0].mxu0 %v328
    %v395 = vpop.f32.mrb[0].mxu0
    %v396 = vadd.f32 0.0, %v395
    %v397 = vpop.f32.mrb[0].mxu0
    %398 = vdwg.mxu0
    %v399 = vadd.f32 %v185, %v396
    %v400 = vtanh.pop %v399
    %v401 = vxor.u32 %v399, 2147483648
    %v402 = vmul.f32 %v401, 1.442695
    %v403 = vpow.pop %v402
    %v404 = vadd.f32 %v403, 1.0
    %v405 = vrcp.pop %v404
    %v406 = vmul.f32 1.0, %v405
    %v407 = vsel %vm238, %v400, %v406
    %408 = vrot.lane.b32.xlu0 %v407, 96
    %v409 = vpop.permute.xlu0 %408
    %410 = vrot.lane.b32.xlu0 %v407, 64
    %v411 = vpop.permute.xlu0 %410
    %412 = vrot.lane.b32.xlu0 %v407, 32
    %v413 = vpop.permute.xlu0 %412
    %v414 = vmul.f32 %v409, %v326
    %v415 = vmul.f32 %v407, %v411
    %v416 = vadd.f32 %v414, %v415
    %v417 = vtanh.pop %v416
    %v418 = vmul.f32 %v413, %v417
    %419 = vmatprep.subr.mxu0 0.0
    %420 = vmatpush1.msra.mxu0 %v218
    %421 = vmatprep.subr.mxu0 0.0
    %422 = vmatpush1.msra.mxu0 %v219
    %423 = vmatprep.subr.mxu0 0.0
    %424 = vmatpush1.msra.mxu0 %v220
    %425 = vmatprep.subr.mxu0 0.0
    %426 = vmatpush1.msra.mxu0 %v221
    %427 = vmatprep.subr.mxu0 0.0
    %428 = vmatpush1.msra.mxu0 %v222
    %429 = vmatprep.subr.mxu0 0.0
    %430 = vmatpush1.msra.mxu0 %v223
    %431 = vmatprep.subr.mxu0 0.0
    %432 = vmatpush1.msra.mxu0 %v224
    %433 = vmatprep.subr.mxu0 0.0
    %434 = vmatpush1.msra.mxu0 %v225
    %435 = vmatprep.subr.mxu0 0.0
    %436 = vmatpush1.msra.mxu0 %v226
    %437 = vmatprep.subr.mxu0 0.0
    %438 = vmatpush1.msra.mxu0 %v227
    %439 = vmatprep.subr.mxu0 0.0
    %440 = vmatpush1.msra.mxu0 %v228
    %441 = vmatprep.subr.mxu0 0.0
    %442 = vmatpush1.msra.mxu0 %v229
    %443 = vmatprep.subr.mxu0 0.0
    %444 = vmatpush1.msra.mxu0 %v230
    %445 = vmatprep.subr.mxu0 0.0
    %446 = vmatpush1.msra.mxu0 %v231
    %447 = vmatprep.subr.mxu0 0.0
    %448 = vmatpush1.msra.mxu0 %v232
    %449 = vmatprep.subr.mxu0 0.0
    %450 = vmatpush1.msra.mxu0 %v233
    %451 = vmatprep.subr.mxu0 0.0
    %452 = vmatpush1.msra.mxu0 0.0
    %453 = vmatprep.subr.mxu0 0.0
    %454 = vmatpush1.msra.mxu0 0.0
    %455 = vmatprep.subr.mxu0 0.0
    %456 = vmatpush1.msra.mxu0 0.0
    %457 = vmatprep.subr.mxu0 0.0
    %458 = vmatpush1.msra.mxu0 0.0
    %459 = vmatprep.subr.mxu0 0.0
    %460 = vmatpush1.msra.mxu0 0.0
    %461 = vmatprep.subr.mxu0 0.0
    %462 = vmatpush1.msra.mxu0 0.0
    %463 = vmatprep.subr.mxu0 0.0
    %464 = vmatpush1.msra.mxu0 0.0
    %465 = vmatprep.subr.mxu0 0.0
    %466 = vmatpush1.msra.mxu0 0.0
    %467 = vmatprep.subr.mxu0 0.0
    %468 = vmatpush1.msra.mxu0 0.0
    %469 = vmatprep.subr.mxu0 0.0
    %470 = vmatpush1.msra.mxu0 0.0
    %471 = vmatprep.subr.mxu0 0.0
    %472 = vmatpush1.msra.mxu0 0.0
    %473 = vmatprep.subr.mxu0 0.0
    %474 = vmatpush1.msra.mxu0 0.0
    %475 = vmatprep.subr.mxu0 0.0
    %476 = vmatpush1.msra.mxu0 0.0
    %477 = vmatprep.subr.mxu0 0.0
    %478 = vmatpush1.msra.mxu0 0.0
    %479 = vmatprep.subr.mxu0 0.0
    %480 = vmatpush1.msra.mxu0 0.0
    %481 = vmatprep.subr.mxu0 0.0
    %482 = vmatpush1.msra.mxu0 0.0
    %483 = vmatprep.mubr.f32.mxu0 0.0
    %484 = vmatmul.mubr.f32.gmra.mrb[0].mxu0 %v418
    %v485 = vpop.f32.mrb[0].mxu0
    %v486 = vadd.f32 0.0, %v485
    %v487 = vpop.f32.mrb[0].mxu0
    %488 = vdwg.mxu0
    %v489 = vadd.f32 %v190, %v486
    %v490 = vtanh.pop %v489
    %v491 = vxor.u32 %v489, 2147483648
    %v492 = vmul.f32 %v491, 1.442695
    %v493 = vpow.pop %v492
    %v494 = vadd.f32 %v493, 1.0
    %v495 = vrcp.pop %v494
    %v496 = vmul.f32 1.0, %v495
    %v497 = vsel %vm238, %v490, %v496
    %498 = vrot.lane.b32.xlu0 %v497, 96
    %v499 = vpop.permute.xlu0 %498
    %500 = vrot.lane.b32.xlu0 %v497, 64
    %v501 = vpop.permute.xlu0 %500
    %502 = vrot.lane.b32.xlu0 %v497, 32
    %v503 = vpop.permute.xlu0 %502
    %v504 = vmul.f32 %v499, %v416
    %v505 = vmul.f32 %v497, %v501
    %v506 = vadd.f32 %v504, %v505
    %v507 = vtanh.pop %v506
    %v508 = vmul.f32 %v503, %v507
    %509 = vmatprep.subr.mxu0 0.0
    %510 = vmatpush1.msra.mxu0 %v218
    %511 = vmatprep.subr.mxu0 0.0
    %512 = vmatpush1.msra.mxu0 %v219
    %513 = vmatprep.subr.mxu0 0.0
    %514 = vmatpush1.msra.mxu0 %v220
    %515 = vmatprep.subr.mxu0 0.0
    %516 = vmatpush1.msra.mxu0 %v221
    %517 = vmatprep.subr.mxu0 0.0
    %518 = vmatpush1.msra.mxu0 %v222
    %519 = vmatprep.subr.mxu0 0.0
    %520 = vmatpush1.msra.mxu0 %v223
    %521 = vmatprep.subr.mxu0 0.0
    %522 = vmatpush1.msra.mxu0 %v224
    %523 = vmatprep.subr.mxu0 0.0
    %524 = vmatpush1.msra.mxu0 %v225
    %525 = vmatprep.subr.mxu0 0.0
    %526 = vmatpush1.msra.mxu0 %v226
    %527 = vmatprep.subr.mxu0 0.0
    %528 = vmatpush1.msra.mxu0 %v227
    %529 = vmatprep.subr.mxu0 0.0
    %530 = vmatpush1.msra.mxu0 %v228
    %531 = vmatprep.subr.mxu0 0.0
    %532 = vmatpush1.msra.mxu0 %v229
    %533 = vmatprep.subr.mxu0 0.0
    %534 = vmatpush1.msra.mxu0 %v230
    %535 = vmatprep.subr.mxu0 0.0
    %536 = vmatpush1.msra.mxu0 %v231
    %537 = vmatprep.subr.mxu0 0.0
    %538 = vmatpush1.msra.mxu0 %v232
    %539 = vmatprep.subr.mxu0 0.0
    %540 = vmatpush1.msra.mxu0 %v233
    %541 = vmatprep.subr.mxu0 0.0
    %542 = vmatpush1.msra.mxu0 0.0
    %543 = vmatprep.subr.mxu0 0.0
    %544 = vmatpush1.msra.mxu0 0.0
    %545 = vmatprep.subr.mxu0 0.0
    %546 = vmatpush1.msra.mxu0 0.0
    %547 = vmatprep.subr.mxu0 0.0
    %548 = vmatpush1.msra.mxu0 0.0
    %549 = vmatprep.subr.mxu0 0.0
    %550 = vmatpush1.msra.mxu0 0.0
    %551 = vmatprep.subr.mxu0 0.0
    %552 = vmatpush1.msra.mxu0 0.0
    %553 = vmatprep.subr.mxu0 0.0
    %554 = vmatpush1.msra.mxu0 0.0
    %555 = vmatprep.subr.mxu0 0.0
    %556 = vmatpush1.msra.mxu0 0.0
    %557 = vmatprep.subr.mxu0 0.0
    %558 = vmatpush1.msra.mxu0 0.0
    %559 = vmatprep.subr.mxu0 0.0
    %560 = vmatpush1.msra.mxu0 0.0
    %561 = vmatprep.subr.mxu0 0.0
    %562 = vmatpush1.msra.mxu0 0.0
    %563 = vmatprep.subr.mxu0 0.0
    %564 = vmatpush1.msra.mxu0 0.0
    %565 = vmatprep.subr.mxu0 0.0
    %566 = vmatpush1.msra.mxu0 0.0
    %567 = vmatprep.subr.mxu0 0.0
    %568 = vmatpush1.msra.mxu0 0.0
    %569 = vmatprep.subr.mxu0 0.0
    %570 = vmatpush1.msra.mxu0 0.0
    %571 = vmatprep.subr.mxu0 0.0
    %572 = vmatpush1.msra.mxu0 0.0
    %573 = vmatprep.mubr.f32.mxu0 0.0
    %574 = vmatmul.mubr.f32.gmra.mrb[0].mxu0 %v508
    %v575 = vpop.f32.mrb[0].mxu0
    %v576 = vadd.f32 0.0, %v575
    %v577 = vpop.f32.mrb[0].mxu0
    %578 = vdwg.mxu0
    %v579 = vadd.f32 %v195, %v576
    %v580 = vtanh.pop %v579
    %v581 = vxor.u32 %v579, 2147483648
    %v582 = vmul.f32 %v581, 1.442695
    %v583 = vpow.pop %v582
    %v584 = vadd.f32 %v583, 1.0
    %v585 = vrcp.pop %v584
    %v586 = vmul.f32 1.0, %v585
    %v587 = vsel %vm238, %v580, %v586
    %588 = vrot.lane.b32.xlu0 %v587, 96
    %v589 = vpop.permute.xlu0 %588
    %590 = vrot.lane.b32.xlu0 %v587, 64
    %v591 = vpop.permute.xlu0 %590
    %592 = vrot.lane.b32.xlu0 %v587, 32
    %v593 = vpop.permute.xlu0 %592
    %v594 = vmul.f32 %v589, %v506
    %v595 = vmul.f32 %v587, %v591
    %v596 = vadd.f32 %v594, %v595
    %v597 = vtanh.pop %v596
    %v598 = vmul.f32 %v593, %v597
    %599 = vmatprep.subr.mxu0 0.0
    %600 = vmatpush1.msra.mxu0 %v218
    %601 = vmatprep.subr.mxu0 0.0
    %602 = vmatpush1.msra.mxu0 %v219
    %603 = vmatprep.subr.mxu0 0.0
    %604 = vmatpush1.msra.mxu0 %v220
    %605 = vmatprep.subr.mxu0 0.0
    %606 = vmatpush1.msra.mxu0 %v221
    %607 = vmatprep.subr.mxu0 0.0
    %608 = vmatpush1.msra.mxu0 %v222
    %609 = vmatprep.subr.mxu0 0.0
    %610 = vmatpush1.msra.mxu0 %v223
    %611 = vmatprep.subr.mxu0 0.0
    %612 = vmatpush1.msra.mxu0 %v224
    %613 = vmatprep.subr.mxu0 0.0
    %614 = vmatpush1.msra.mxu0 %v225
    %615 = vmatprep.subr.mxu0 0.0
    %616 = vmatpush1.msra.mxu0 %v226
    %617 = vmatprep.subr.mxu0 0.0
    %618 = vmatpush1.msra.mxu0 %v227
    %619 = vmatprep.subr.mxu0 0.0
    %620 = vmatpush1.msra.mxu0 %v228
    %621 = vmatprep.subr.mxu0 0.0
    %622 = vmatpush1.msra.mxu0 %v229
    %623 = vmatprep.subr.mxu0 0.0
    %624 = vmatpush1.msra.mxu0 %v230
    %625 = vmatprep.subr.mxu0 0.0
    %626 = vmatpush1.msra.mxu0 %v231
    %627 = vmatprep.subr.mxu0 0.0
    %628 = vmatpush1.msra.mxu0 %v232
    %629 = vmatprep.subr.mxu0 0.0
    %630 = vmatpush1.msra.mxu0 %v233
    %631 = vmatprep.subr.mxu0 0.0
    %632 = vmatpush1.msra.mxu0 0.0
    %633 = vmatprep.subr.mxu0 0.0
    %634 = vmatpush1.msra.mxu0 0.0
    %635 = vmatprep.subr.mxu0 0.0
    %636 = vmatpush1.msra.mxu0 0.0
    %637 = vmatprep.subr.mxu0 0.0
    %638 = vmatpush1.msra.mxu0 0.0
    %639 = vmatprep.subr.mxu0 0.0
    %640 = vmatpush1.msra.mxu0 0.0
    %641 = vmatprep.subr.mxu0 0.0
    %642 = vmatpush1.msra.mxu0 0.0
    %643 = vmatprep.subr.mxu0 0.0
    %644 = vmatpush1.msra.mxu0 0.0
    %645 = vmatprep.subr.mxu0 0.0
    %646 = vmatpush1.msra.mxu0 0.0
    %647 = vmatprep.subr.mxu0 0.0
    %648 = vmatpush1.msra.mxu0 0.0
    %649 = vmatprep.subr.mxu0 0.0
    %650 = vmatpush1.msra.mxu0 0.0
    %651 = vmatprep.subr.mxu0 0.0
    %652 = vmatpush1.msra.mxu0 0.0
    %653 = vmatprep.subr.mxu0 0.0
    %654 = vmatpush1.msra.mxu0 0.0
    %655 = vmatprep.subr.mxu0 0.0
    %656 = vmatpush1.msra.mxu0 0.0
    %657 = vmatprep.subr.mxu0 0.0
    %658 = vmatpush1.msra.mxu0 0.0
    %659 = vmatprep.subr.mxu0 0.0
    %660 = vmatpush1.msra.mxu0 0.0
    %661 = vmatprep.subr.mxu0 0.0
    %662 = vmatpush1.msra.mxu0 0.0
    %663 = vmatprep.mubr.f32.mxu0 0.0
    %664 = vmatmul.mubr.f32.gmra.mrb[0].mxu0 %v598
    %v665 = vpop.f32.mrb[0].mxu0
    %v666 = vadd.f32 0.0, %v665
    %v667 = vpop.f32.mrb[0].mxu0
    %668 = vdwg.mxu0
    %v669 = vadd.f32 %v200, %v666
    %v670 = vtanh.pop %v669
    %v671 = vxor.u32 %v669, 2147483648
    %v672 = vmul.f32 %v671, 1.442695
    %v673 = vpow.pop %v672
    %v674 = vadd.f32 %v673, 1.0
    %v675 = vrcp.pop %v674
    %v676 = vmul.f32 1.0, %v675
    %v677 = vsel %vm238, %v670, %v676
    %678 = vrot.lane.b32.xlu0 %v677, 96
    %v679 = vpop.permute.xlu0 %678
    %680 = vrot.lane.b32.xlu0 %v677, 64
    %v681 = vpop.permute.xlu0 %680
    %682 = vrot.lane.b32.xlu0 %v677, 32
    %v683 = vpop.permute.xlu0 %682
    %v684 = vmul.f32 %v679, %v596
    %v685 = vmul.f32 %v677, %v681
    %v686 = vadd.f32 %v684, %v685
    %v687 = vtanh.pop %v686
    %v688 = vmul.f32 %v683, %v687
    %689 = vmatprep.subr.mxu0 0.0
    %690 = vmatpush1.msra.mxu0 %v218
    %691 = vmatprep.subr.mxu0 0.0
    %692 = vmatpush1.msra.mxu0 %v219
    %693 = vmatprep.subr.mxu0 0.0
    %694 = vmatpush1.msra.mxu0 %v220
    %695 = vmatprep.subr.mxu0 0.0
    %696 = vmatpush1.msra.mxu0 %v221
    %697 = vmatprep.subr.mxu0 0.0
    %698 = vmatpush1.msra.mxu0 %v222
    %699 = vmatprep.subr.mxu0 0.0
    %700 = vmatpush1.msra.mxu0 %v223
    %701 = vmatprep.subr.mxu0 0.0
    %702 = vmatpush1.msra.mxu0 %v224
    %703 = vmatprep.subr.mxu0 0.0
    %704 = vmatpush1.msra.mxu0 %v225
    %705 = vmatprep.subr.mxu0 0.0
    %706 = vmatpush1.msra.mxu0 %v226
    %707 = vmatprep.subr.mxu0 0.0
    %708 = vmatpush1.msra.mxu0 %v227
    %709 = vmatprep.subr.mxu0 0.0
    %710 = vmatpush1.msra.mxu0 %v228
    %711 = vmatprep.subr.mxu0 0.0
    %712 = vmatpush1.msra.mxu0 %v229
    %713 = vmatprep.subr.mxu0 0.0
    %714 = vmatpush1.msra.mxu0 %v230
    %715 = vmatprep.subr.mxu0 0.0
    %716 = vmatpush1.msra.mxu0 %v231
    %717 = vmatprep.subr.mxu0 0.0
    %718 = vmatpush1.msra.mxu0 %v232
    %719 = vmatprep.subr.mxu0 0.0
    %720 = vmatpush1.msra.mxu0 %v233
    %721 = vmatprep.subr.mxu0 0.0
    %722 = vmatpush1.msra.mxu0 0.0
    %723 = vmatprep.subr.mxu0 0.0
    %724 = vmatpush1.msra.mxu0 0.0
    %725 = vmatprep.subr.mxu0 0.0
    %726 = vmatpush1.msra.mxu0 0.0
    %727 = vmatprep.subr.mxu0 0.0
    %728 = vmatpush1.msra.mxu0 0.0
    %729 = vmatprep.subr.mxu0 0.0
    %730 = vmatpush1.msra.mxu0 0.0
    %731 = vmatprep.subr.mxu0 0.0
    %732 = vmatpush1.msra.mxu0 0.0
    %733 = vmatprep.subr.mxu0 0.0
    %734 = vmatpush1.msra.mxu0 0.0
    %735 = vmatprep.subr.mxu0 0.0
    %736 = vmatpush1.msra.mxu0 0.0
    %737 = vmatprep.subr.mxu0 0.0
    %738 = vmatpush1.msra.mxu0 0.0
    %739 = vmatprep.subr.mxu0 0.0
    %740 = vmatpush1.msra.mxu0 0.0
    %741 = vmatprep.subr.mxu0 0.0
    %742 = vmatpush1.msra.mxu0 0.0
    %743 = vmatprep.subr.mxu0 0.0
    %744 = vmatpush1.msra.mxu0 0.0
    %745 = vmatprep.subr.mxu0 0.0
    %746 = vmatpush1.msra.mxu0 0.0
    %747 = vmatprep.subr.mxu0 0.0
    %748 = vmatpush1.msra.mxu0 0.0
    %749 = vmatprep.subr.mxu0 0.0
    %750 = vmatpush1.msra.mxu0 0.0
    %751 = vmatprep.subr.mxu0 0.0
    %752 = vmatpush1.msra.mxu0 0.0
    %753 = vmatprep.mubr.f32.mxu0 0.0
    %754 = vmatmul.mubr.f32.gmra.mrb[0].mxu0 %v688
    %v755 = vpop.f32.mrb[0].mxu0
    %v756 = vadd.f32 0.0, %v755
    %v757 = vpop.f32.mrb[0].mxu0
    %758 = vdwg.mxu0
    %v759 = vadd.f32 %v205, %v756
    %v760 = vtanh.pop %v759
    %v761 = vxor.u32 %v759, 2147483648
    %v762 = vmul.f32 %v761, 1.442695
    %v763 = vpow.pop %v762
    %v764 = vadd.f32 %v763, 1.0
    %v765 = vrcp.pop %v764
    %v766 = vmul.f32 1.0, %v765
    %v767 = vsel %vm238, %v760, %v766
    %768 = vrot.lane.b32.xlu0 %v767, 96
    %v769 = vpop.permute.xlu0 %768
    %770 = vrot.lane.b32.xlu0 %v767, 64
    %v771 = vpop.permute.xlu0 %770
    %772 = vrot.lane.b32.xlu0 %v767, 32
    %v773 = vpop.permute.xlu0 %772
    %v774 = vmul.f32 %v769, %v686
    %v775 = vmul.f32 %v767, %v771
    %v776 = vadd.f32 %v774, %v775
    %v777 = vtanh.pop %v776
    %v778 = vmul.f32 %v773, %v777
    %779 = vmatprep.subr.mxu0 0.0
    %780 = vmatpush1.msra.mxu0 %v218
    %781 = vmatprep.subr.mxu0 0.0
    %782 = vmatpush1.msra.mxu0 %v219
    %783 = vmatprep.subr.mxu0 0.0
    %784 = vmatpush1.msra.mxu0 %v220
    %785 = vmatprep.subr.mxu0 0.0
    %786 = vmatpush1.msra.mxu0 %v221
    %787 = vmatprep.subr.mxu0 0.0
    %788 = vmatpush1.msra.mxu0 %v222
    %789 = vmatprep.subr.mxu0 0.0
    %790 = vmatpush1.msra.mxu0 %v223
    %791 = vmatprep.subr.mxu0 0.0
    %792 = vmatpush1.msra.mxu0 %v224
    %793 = vmatprep.subr.mxu0 0.0
    %794 = vmatpush1.msra.mxu0 %v225
    %795 = vmatprep.subr.mxu0 0.0
    %796 = vmatpush1.msra.mxu0 %v226
    %797 = vmatprep.subr.mxu0 0.0
    %798 = vmatpush1.msra.mxu0 %v227
    %799 = vmatprep.subr.mxu0 0.0
    %800 = vmatpush1.msra.mxu0 %v228
    %801 = vmatprep.subr.mxu0 0.0
    %802 = vmatpush1.msra.mxu0 %v229
    %803 = vmatprep.subr.mxu0 0.0
    %804 = vmatpush1.msra.mxu0 %v230
    %805 = vmatprep.subr.mxu0 0.0
    %806 = vmatpush1.msra.mxu0 %v231
    %807 = vmatprep.subr.mxu0 0.0
    %808 = vmatpush1.msra.mxu0 %v232
    %809 = vmatprep.subr.mxu0 0.0
    %810 = vmatpush1.msra.mxu0 %v233
    %811 = vmatprep.subr.mxu0 0.0
    %812 = vmatpush1.msra.mxu0 0.0
    %813 = vmatprep.subr.mxu0 0.0
    %814 = vmatpush1.msra.mxu0 0.0
    %815 = vmatprep.subr.mxu0 0.0
    %816 = vmatpush1.msra.mxu0 0.0
    %817 = vmatprep.subr.mxu0 0.0
    %818 = vmatpush1.msra.mxu0 0.0
    %819 = vmatprep.subr.mxu0 0.0
    %820 = vmatpush1.msra.mxu0 0.0
    %821 = vmatprep.subr.mxu0 0.0
    %822 = vmatpush1.msra.mxu0 0.0
    %823 = vmatprep.subr.mxu0 0.0
    %824 = vmatpush1.msra.mxu0 0.0
    %825 = vmatprep.subr.mxu0 0.0
    %826 = vmatpush1.msra.mxu0 0.0
    %827 = vmatprep.subr.mxu0 0.0
    %828 = vmatpush1.msra.mxu0 0.0
    %829 = vmatprep.subr.mxu0 0.0
    %830 = vmatpush1.msra.mxu0 0.0
    %831 = vmatprep.subr.mxu0 0.0
    %832 = vmatpush1.msra.mxu0 0.0
    %833 = vmatprep.subr.mxu0 0.0
    %834 = vmatpush1.msra.mxu0 0.0
    %835 = vmatprep.subr.mxu0 0.0
    %836 = vmatpush1.msra.mxu0 0.0
    %837 = vmatprep.subr.mxu0 0.0
    %838 = vmatpush1.msra.mxu0 0.0
    %839 = vmatprep.subr.mxu0 0.0
    %840 = vmatpush1.msra.mxu0 0.0
    %841 = vmatprep.subr.mxu0 0.0
    %842 = vmatpush1.msra.mxu0 0.0
    %843 = vmatprep.mubr.f32.mxu0 0.0
    %844 = vmatmul.mubr.f32.gmra.mrb[0].mxu0 %v778
    %v845 = vpop.f32.mrb[0].mxu0
    %v846 = vadd.f32 0.0, %v845
    %v847 = vpop.f32.mrb[0].mxu0
    %848 = vdwg.mxu0
    %v849 = vadd.f32 %v210, %v846
    %v850 = vtanh.pop %v849
    %v851 = vxor.u32 %v849, 2147483648
    %v852 = vmul.f32 %v851, 1.442695
    %v853 = vpow.pop %v852
    %v854 = vadd.f32 %v853, 1.0
    %v855 = vrcp.pop %v854
    %v856 = vmul.f32 1.0, %v855
    %v857 = vsel %vm238, %v850, %v856
    %858 = vrot.lane.b32.xlu0 %v857, 96
    %v859 = vpop.permute.xlu0 %858
    %860 = vrot.lane.b32.xlu0 %v857, 64
    %v861 = vpop.permute.xlu0 %860
    %862 = vrot.lane.b32.xlu0 %v857, 32
    %v863 = vpop.permute.xlu0 %862
    %v864 = vmul.f32 %v859, %v776
    %v865 = vmul.f32 %v857, %v861
    %v866 = vadd.f32 %v864, %v865
    %v867 = vtanh.pop %v866
    %v868 = vmul.f32 %v863, %v867
    %869 = vmatprep.subr.mxu0 0.0
    %870 = vmatpush1.msra.mxu0 %v218
    %871 = vmatprep.subr.mxu0 0.0
    %872 = vmatpush1.msra.mxu0 %v219
    %873 = vmatprep.subr.mxu0 0.0
    %874 = vmatpush1.msra.mxu0 %v220
    %875 = vmatprep.subr.mxu0 0.0
    %876 = vmatpush1.msra.mxu0 %v221
    %877 = vmatprep.subr.mxu0 0.0
    %878 = vmatpush1.msra.mxu0 %v222
    %879 = vmatprep.subr.mxu0 0.0
    %880 = vmatpush1.msra.mxu0 %v223
    %881 = vmatprep.subr.mxu0 0.0
    %882 = vmatpush1.msra.mxu0 %v224
    %883 = vmatprep.subr.mxu0 0.0
    %884 = vmatpush1.msra.mxu0 %v225
    %885 = vmatprep.subr.mxu0 0.0
    %886 = vmatpush1.msra.mxu0 %v226
    %887 = vmatprep.subr.mxu0 0.0
    %888 = vmatpush1.msra.mxu0 %v227
    %889 = vmatprep.subr.mxu0 0.0
    %890 = vmatpush1.msra.mxu0 %v228
    %891 = vmatprep.subr.mxu0 0.0
    %892 = vmatpush1.msra.mxu0 %v229
    %893 = vmatprep.subr.mxu0 0.0
    %894 = vmatpush1.msra.mxu0 %v230
    %895 = vmatprep.subr.mxu0 0.0
    %896 = vmatpush1.msra.mxu0 %v231
    %897 = vmatprep.subr.mxu0 0.0
    %898 = vmatpush1.msra.mxu0 %v232
    %899 = vmatprep.subr.mxu0 0.0
    %900 = vmatpush1.msra.mxu0 %v233
    %901 = vmatprep.subr.mxu0 0.0
    %902 = vmatpush1.msra.mxu0 0.0
    %903 = vmatprep.subr.mxu0 0.0
    %904 = vmatpush1.msra.mxu0 0.0
    %905 = vmatprep.subr.mxu0 0.0
    %906 = vmatpush1.msra.mxu0 0.0
    %907 = vmatprep.subr.mxu0 0.0
    %908 = vmatpush1.msra.mxu0 0.0
    %909 = vmatprep.subr.mxu0 0.0
    %910 = vmatpush1.msra.mxu0 0.0
    %911 = vmatprep.subr.mxu0 0.0
    %912 = vmatpush1.msra.mxu0 0.0
    %913 = vmatprep.subr.mxu0 0.0
    %914 = vmatpush1.msra.mxu0 0.0
    %915 = vmatprep.subr.mxu0 0.0
    %916 = vmatpush1.msra.mxu0 0.0
    %917 = vmatprep.subr.mxu0 0.0
    %918 = vmatpush1.msra.mxu0 0.0
    %919 = vmatprep.subr.mxu0 0.0
    %920 = vmatpush1.msra.mxu0 0.0
    %921 = vmatprep.subr.mxu0 0.0
    %922 = vmatpush1.msra.mxu0 0.0
    %923 = vmatprep.subr.mxu0 0.0
    %924 = vmatpush1.msra.mxu0 0.0
    %925 = vmatprep.subr.mxu0 0.0
    %926 = vmatpush1.msra.mxu0 0.0
    %927 = vmatprep.subr.mxu0 0.0
    %928 = vmatpush1.msra.mxu0 0.0
    %929 = vmatprep.subr.mxu0 0.0
    %930 = vmatpush1.msra.mxu0 0.0
    %931 = vmatprep.subr.mxu0 0.0
    %932 = vmatpush1.msra.mxu0 0.0
    %933 = vmatprep.mubr.f32.mxu0 0.0
    %934 = vmatmul.mubr.f32.gmra.mrb[0].mxu0 %v868
    %v935 = vpop.f32.mrb[0].mxu0
    %v936 = vadd.f32 0.0, %v935
    %v937 = vpop.f32.mrb[0].mxu0
    %938 = vdwg.mxu0
    %v939 = vadd.f32 %v215, %v936
    %v940 = vtanh.pop %v939
    %v941 = vxor.u32 %v939, 2147483648
    %v942 = vmul.f32 %v941, 1.442695
    %v943 = vpow.pop %v942
    %v944 = vadd.f32 %v943, 1.0
    %v945 = vrcp.pop %v944
    %v946 = vmul.f32 1.0, %v945
    %v947 = vsel %vm238, %v940, %v946
    %948 = vrot.lane.b32.xlu0 %v947, 96
    %v949 = vpop.permute.xlu0 %948
    %950 = vrot.lane.b32.xlu0 %v947, 64
    %v951 = vpop.permute.xlu0 %950
    %952 = vrot.lane.b32.xlu0 %v947, 32
    %v953 = vpop.permute.xlu0 %952
    %v954 = vmul.f32 %v949, %v866
    %v955 = vmul.f32 %v947, %v951
    %v956 = vadd.f32 %v954, %v955
    %v957 = vtanh.pop %v956
    %v958 = vmul.f32 %v953, %v957
    %v959 = vld [vmem:[#allocation5] sm:$0xff]
    %v960 = vld [vmem:[#allocation5 + $0x8] sm:$0xff]
    %v961 = vld [vmem:[#allocation5 + $0x10] sm:$0xff]
    %v962 = vld [vmem:[#allocation5 + $0x18] sm:$0xff]
    %v963 = vld [vmem:[#allocation5 + $0x20] sm:$0xff]
    %v964 = vld [vmem:[#allocation5 + $0x28] sm:$0xff]
    %v965 = vld [vmem:[#allocation5 + $0x30] sm:$0xff]
    %v966 = vld [vmem:[#allocation5 + $0x38] sm:$0xff]
    %v967 = vld [vmem:[#allocation5 + $0x40] sm:$0xff]
    %v968 = vld [vmem:[#allocation5 + $0x48] sm:$0xff]
    %v969 = vld [vmem:[#allocation5 + $0x50] sm:$0xff]
    %v970 = vld [vmem:[#allocation5 + $0x58] sm:$0xff]
    %v971 = vld [vmem:[#allocation5 + $0x60] sm:$0xff]
    %v972 = vld [vmem:[#allocation5 + $0x68] sm:$0xff]
    %v973 = vld [vmem:[#allocation5 + $0x70] sm:$0xff]
    %v974 = vld [vmem:[#allocation5 + $0x78] sm:$0xff]
    %v975 = vld [vmem:[%s5] sm:$0x1]
    %v977 = vlaneseq
    %v978 = vshrl.u32 %v977, 7
    %v979 = vsub.s32 0, %v978
    %v980 = vrot.slane %v975, %v979
    %982 = vmatprep.subr.mxu0 0.0
    %983 = vmatpush1.msra.mxu0 %v959
    %984 = vmatprep.subr.mxu0 0.0
    %985 = vmatpush1.msra.mxu0 %v960
    %986 = vmatprep.subr.mxu0 0.0
    %987 = vmatpush1.msra.mxu0 %v961
    %988 = vmatprep.subr.mxu0 0.0
    %989 = vmatpush1.msra.mxu0 %v962
    %990 = vmatprep.subr.mxu0 0.0
    %991 = vmatpush1.msra.mxu0 %v963
    %992 = vmatprep.subr.mxu0 0.0
    %993 = vmatpush1.msra.mxu0 %v964
    %994 = vmatprep.subr.mxu0 0.0
    %995 = vmatpush1.msra.mxu0 %v965
    %996 = vmatprep.subr.mxu0 0.0
    %997 = vmatpush1.msra.mxu0 %v966
    %998 = vmatprep.subr.mxu0 0.0
    %999 = vmatpush1.msra.mxu0 %v967
    %1000 = vmatprep.subr.mxu0 0.0
    %1001 = vmatpush1.msra.mxu0 %v968
    %1002 = vmatprep.subr.mxu0 0.0
    %1003 = vmatpush1.msra.mxu0 %v969
    %1004 = vmatprep.subr.mxu0 0.0
    %1005 = vmatpush1.msra.mxu0 %v970
    %1006 = vmatprep.subr.mxu0 0.0
    %1007 = vmatpush1.msra.mxu0 %v971
    %1008 = vmatprep.subr.mxu0 0.0
    %1009 = vmatpush1.msra.mxu0 %v972
    %1010 = vmatprep.subr.mxu0 0.0
    %1011 = vmatpush1.msra.mxu0 %v973
    %1012 = vmatprep.subr.mxu0 0.0
    %1013 = vmatpush1.msra.mxu0 %v974
    %1014 = vmatprep.subr.mxu0 0.0
    %1015 = vmatpush1.msra.mxu0 0.0
    %1016 = vmatprep.subr.mxu0 0.0
    %1017 = vmatpush1.msra.mxu0 0.0
    %1018 = vmatprep.subr.mxu0 0.0
    %1019 = vmatpush1.msra.mxu0 0.0
    %1020 = vmatprep.subr.mxu0 0.0
    %1021 = vmatpush1.msra.mxu0 0.0
    %1022 = vmatprep.subr.mxu0 0.0
    %1023 = vmatpush1.msra.mxu0 0.0
    %1024 = vmatprep.subr.mxu0 0.0
    %1025 = vmatpush1.msra.mxu0 0.0
    %1026 = vmatprep.subr.mxu0 0.0
    %1027 = vmatpush1.msra.mxu0 0.0
    %1028 = vmatprep.subr.mxu0 0.0
    %1029 = vmatpush1.msra.mxu0 0.0
    %1030 = vmatprep.subr.mxu0 0.0
    %1031 = vmatpush1.msra.mxu0 0.0
    %1032 = vmatprep.subr.mxu0 0.0
    %1033 = vmatpush1.msra.mxu0 0.0
    %1034 = vmatprep.subr.mxu0 0.0
    %1035 = vmatpush1.msra.mxu0 0.0
    %1036 = vmatprep.subr.mxu0 0.0
    %1037 = vmatpush1.msra.mxu0 0.0
    %1038 = vmatprep.subr.mxu0 0.0
    %1039 = vmatpush1.msra.mxu0 0.0
    %1040 = vmatprep.subr.mxu0 0.0
    %1041 = vmatpush1.msra.mxu0 0.0
    %1042 = vmatprep.subr.mxu0 0.0
    %1043 = vmatpush1.msra.mxu0 0.0
    %1044 = vmatprep.subr.mxu0 0.0
    %1045 = vmatpush1.msra.mxu0 0.0
    %1046 = vmatprep.mubr.f32.mxu0 0.0
    %1047 = vmatmul.mubr.f32.gmra.mrb[0].mxu0 %v958
    %v1048 = vpop.f32.mrb[0].mxu0
    %v1049 = vadd.f32 %v980, %v1048
    %v1050 = vpop.f32.mrb[0].mxu0
    %1051 = vdwg.mxu0
    %v1052 = vmax.f32 %v1049, 0.0
    %v1053 = vld [vmem:[#allocation7] sm:$0xff]
    %v1054 = vld [vmem:[#allocation7 + $0x8] sm:$0xff]
    %v1055 = vld [vmem:[#allocation7 + $0x10] sm:$0xff]
    %v1056 = vld [vmem:[#allocation7 + $0x18] sm:$0xff]
    %v1057 = vld [vmem:[#allocation7 + $0x20] sm:$0xff]
    %v1058 = vld [vmem:[#allocation7 + $0x28] sm:$0xff]
    %v1059 = vld [vmem:[#allocation7 + $0x30] sm:$0xff]
    %v1060 = vld [vmem:[#allocation7 + $0x38] sm:$0xff]
    %v1061 = vld [vmem:[#allocation7 + $0x40] sm:$0xff]
    %v1062 = vld [vmem:[#allocation7 + $0x48] sm:$0xff]
    %v1063 = vld [vmem:[#allocation7 + $0x50] sm:$0xff]
    %v1064 = vld [vmem:[#allocation7 + $0x58] sm:$0xff]
    %v1065 = vld [vmem:[#allocation7 + $0x60] sm:$0xff]
    %v1066 = vld [vmem:[#allocation7 + $0x68] sm:$0xff]
    %v1067 = vld [vmem:[#allocation7 + $0x70] sm:$0xff]
    %v1068 = vld [vmem:[#allocation7 + $0x78] sm:$0xff]
    %v1069 = vld [vmem:[%s7] sm:$0x1]
    %v1071 = vlaneseq
    %v1072 = vshrl.u32 %v1071, 7
    %v1073 = vsub.s32 0, %v1072
    %v1074 = vrot.slane %v1069, %v1073
    %1076 = vmatprep.subr.mxu0 0.0
    %1077 = vmatpush1.msra.mxu0 %v1053
    %1078 = vmatprep.subr.mxu0 0.0
    %1079 = vmatpush1.msra.mxu0 %v1054
    %1080 = vmatprep.subr.mxu0 0.0
    %1081 = vmatpush1.msra.mxu0 %v1055
    %1082 = vmatprep.subr.mxu0 0.0
    %1083 = vmatpush1.msra.mxu0 %v1056
    %1084 = vmatprep.subr.mxu0 0.0
    %1085 = vmatpush1.msra.mxu0 %v1057
    %1086 = vmatprep.subr.mxu0 0.0
    %1087 = vmatpush1.msra.mxu0 %v1058
    %1088 = vmatprep.subr.mxu0 0.0
    %1089 = vmatpush1.msra.mxu0 %v1059
    %1090 = vmatprep.subr.mxu0 0.0
    %1091 = vmatpush1.msra.mxu0 %v1060
    %1092 = vmatprep.subr.mxu0 0.0
    %1093 = vmatpush1.msra.mxu0 %v1061
    %1094 = vmatprep.subr.mxu0 0.0
    %1095 = vmatpush1.msra.mxu0 %v1062
    %1096 = vmatprep.subr.mxu0 0.0
    %1097 = vmatpush1.msra.mxu0 %v1063
    %1098 = vmatprep.subr.mxu0 0.0
    %1099 = vmatpush1.msra.mxu0 %v1064
    %1100 = vmatprep.subr.mxu0 0.0
    %1101 = vmatpush1.msra.mxu0 %v1065
    %1102 = vmatprep.subr.mxu0 0.0
    %1103 = vmatpush1.msra.mxu0 %v1066
    %1104 = vmatprep.subr.mxu0 0.0
    %1105 = vmatpush1.msra.mxu0 %v1067
    %1106 = vmatprep.subr.mxu0 0.0
    %1107 = vmatpush1.msra.mxu0 %v1068
    %1108 = vmatprep.subr.mxu0 0.0
    %1109 = vmatpush1.msra.mxu0 0.0
    %1110 = vmatprep.subr.mxu0 0.0
    %1111 = vmatpush1.msra.mxu0 0.0
    %1112 = vmatprep.subr.mxu0 0.0
    %1113 = vmatpush1.msra.mxu0 0.0
    %1114 = vmatprep.subr.mxu0 0.0
    %1115 = vmatpush1.msra.mxu0 0.0
    %1116 = vmatprep.subr.mxu0 0.0
    %1117 = vmatpush1.msra.mxu0 0.0
    %1118 = vmatprep.subr.mxu0 0.0
    %1119 = vmatpush1.msra.mxu0 0.0
    %1120 = vmatprep.subr.mxu0 0.0
    %1121 = vmatpush1.msra.mxu0 0.0
    %1122 = vmatprep.subr.mxu0 0.0
    %1123 = vmatpush1.msra.mxu0 0.0
    %1124 = vmatprep.subr.mxu0 0.0
    %1125 = vmatpush1.msra.mxu0 0.0
    %1126 = vmatprep.subr.mxu0 0.0
    %1127 = vmatpush1.msra.mxu0 0.0
    %1128 = vmatprep.subr.mxu0 0.0
    %1129 = vmatpush1.msra.mxu0 0.0
    %1130 = vmatprep.subr.mxu0 0.0
    %1131 = vmatpush1.msra.mxu0 0.0
    %1132 = vmatprep.subr.mxu0 0.0
    %1133 = vmatpush1.msra.mxu0 0.0
    %1134 = vmatprep.subr.mxu0 0.0
    %1135 = vmatpush1.msra.mxu0 0.0
    %1136 = vmatprep.subr.mxu0 0.0
    %1137 = vmatpush1.msra.mxu0 0.0
    %1138 = vmatprep.subr.mxu0 0.0
    %1139 = vmatpush1.msra.mxu0 0.0
    %1140 = vmatprep.mubr.f32.mxu0 0.0
    %1141 = vmatmul.mubr.f32.gmra.mrb[0].mxu0 %v1052
    %v1142 = vpop.f32.mrb[0].mxu0
    %v1143 = vadd.f32 %v1074, %v1142
    %v1144 = vpop.f32.mrb[0].mxu0
    %1145 = vdwg.mxu0
    %1146 = vst [vmem:[#allocation8] sm:$0xff] %v1143
    // Predicated region
    $region46: #{tpu_custom_call.1} parent=1 // pred_check
      _
    $region47: #{tpu_custom_call.1} parent=1 // pred_check_branch
      %1148 = sbr.rel (0) target = $region49
    $region48: #{tpu_custom_call.1} parent=1 // pred_region
      %s1150 = ssub.s32 128, 128
      %1151 = vsyncadd [#allocation4], %s1150
      %s1153 = sshll.u32 [#allocation8], 4
      %s1154 = int_to_ptr.vmem [resolvable:$true] %s1153
      %1156 = dma.vmem_to_hbm [thread:$0]  %s1154, 128, %s8, [#allocation4]
    $region49: #{tpu_custom_call.1} parent=1 // pred_fallthru
      _
    // Predicated region
    $region50: #{tpu_custom_call.1} parent=1 // pred_check
      _
    $region51: #{tpu_custom_call.1} parent=1 // pred_check_branch
      %1158 = sbr.rel (0) target = $region53
    $region52: #{tpu_custom_call.1} parent=1 // pred_region
      %1159 = dma.done [#allocation4], 128
    $region53: #{tpu_custom_call.1} parent=1 // pred_fallthru
      _
    %1160 = vsyncpa [#allocation3], 1
    %1161 = vsyncpa [#allocation6], 1
    %1162 = vsyncpa [#allocation4], 1

</llo_original>
